<compile_context>
chip_gen: v5e
topology: v5e:2x2
jax: 0.10.0
libtpu: 0.0.40
codegen_flags: <defaults>
</compile_context>

<pallas_src>
import jax
import jax.numpy as jnp
import numpy as np
from jax import lax
from jax.experimental import pallas as pl
from jax.experimental.pallas import tpu as pltpu


def _round_up(x, m):
    return ((x + m - 1) // m) * m


def _pick_tile(dim, candidates):
    for c in candidates:
        if c <= dim and dim % c == 0:
            return c
    return dim


def _vmem_limit(nbytes):
    # Explicit scoped-VMEM budget: 2x headroom, >= 16 MiB, capped below the
    # 64 MiB physical VMEM of v7x.
    return int(min(max(2 * nbytes, 16 * 1024 * 1024), 60 * 1024 * 1024))


# ----------------------------------------------------------------------------
# Generic tiled matmul + bias (used for the input projection and the FC).
# ----------------------------------------------------------------------------
def _matmul_bias_kernel(x_ref, w_ref, b_ref, o_ref, acc_ref):
    @pl.when(pl.program_id(2) == 0)
    def _():
        acc_ref[...] = jnp.zeros_like(acc_ref)

    acc_ref[...] += jnp.dot(x_ref[...], w_ref[...],
                            preferred_element_type=jnp.float32)

    @pl.when(pl.program_id(2) == pl.num_programs(2) - 1)
    def _():
        o_ref[...] = (acc_ref[...]
                      + b_ref[...].astype(jnp.float32)).astype(o_ref.dtype)


def matmul_bias_pallas(x, w, b, out_dtype=jnp.float32):
    """out = x @ w + b; (M, N) grid axes 'parallel' (megacore on v7x)."""
    M, K = x.shape
    K2, N = w.shape
    assert K == K2 and b.shape == (1, N)
    tm = _pick_tile(M, (512, 256, 128, 64, 32, 16))
    tn = _pick_tile(N, (512, 256, 128))
    tk = _pick_tile(K, (512, 256, 128))
    grid = (M // tm, N // tn, K // tk)

    need = (2 * tm * tk * x.dtype.itemsize        # x tile (double-buffered)
            + 2 * tk * tn * w.dtype.itemsize      # w tile
            + 2 * tn * b.dtype.itemsize           # bias tile
            + 2 * tm * tn * jnp.dtype(out_dtype).itemsize   # out tile
            + tm * tn * 4)                        # f32 accumulator scratch

    grid_spec = pltpu.PrefetchScalarGridSpec(
        num_scalar_prefetch=0,
        grid=grid,
        in_specs=[
            pl.BlockSpec((tm, tk), lambda i, j, k: (i, k)),   # x
            pl.BlockSpec((tk, tn), lambda i, j, k: (k, j)),   # w
            pl.BlockSpec((1, tn), lambda i, j, k: (0, j)),    # bias
        ],
        out_specs=pl.BlockSpec((tm, tn), lambda i, j, k: (i, j)),
        scratch_shapes=[pltpu.VMEM((tm, tn), jnp.float32)],
    )
    return pl.pallas_call(
        _matmul_bias_kernel,
        out_shape=jax.ShapeDtypeStruct((M, N), out_dtype),
        grid_spec=grid_spec,
        compiler_params=pltpu.CompilerParams(
            dimension_semantics=("parallel", "parallel", "arbitrary"),
            vmem_limit_bytes=_vmem_limit(need)),
    )(x, w, b)


# ----------------------------------------------------------------------------
# Sequential LSTM recurrence (only the h/c-dependent part lives here).
# ----------------------------------------------------------------------------
def _sigmoid(x):
    # sigmoid(x) = 0.5*tanh(0.5*x) + 0.5 -> one EUP tanh instead of exp+recip.
    return 0.5 * jnp.tanh(0.5 * x) + 0.5


def _lstm_recurrence_kernel(gx_ref, whh_ref, hs_ref, h_sc, c_sc):
    """One grid step = one time chunk (sequential; h/c carried in VMEM).

    gx_ref : (T_CHUNK*B_pad, 4*H_pad) f32   precomputed x @ W_ih^T + bias
    whh_ref: (H_pad, 4*H_pad)         bf16  W_hh^T (gate-block padded)
    hs_ref : (T_CHUNK*B_pad, H_pad)   bf16  hidden-state history (output)
    h_sc, c_sc : (B_pad, H_pad)       f32   state carried across grid steps
    """
    @pl.when(pl.program_id(0) == 0)
    def _():
        h_sc[...] = jnp.zeros_like(h_sc)
        c_sc[...] = jnp.zeros_like(c_sc)

    batch = h_sc.shape[0]
    hidden = h_sc.shape[1]
    t_chunk = gx_ref.shape[0] // batch

    # Invariant weight load hoisted above the unrolled recurrence.
    whh = whh_ref[...]
    # TODO(synk): park W_hh^T in MXU staging registers for the whole chunk
    # (pltpu.matmul_push_rhs / matmul_acc_lhs / matmul_pop) to avoid
    # re-latching the weight tile each timestep on the serial h->h path.

    def step(t, carry):
        h, c = carry
        r0 = pl.multiple_of(t * batch, batch)          # sublane-aligned rows
        gates = gx_ref[pl.ds(r0, batch), :] + jnp.dot(
            h.astype(jnp.bfloat16), whh, preferred_element_type=jnp.float32)
        i_g = _sigmoid(gates[:, 0 * hidden:1 * hidden])
        f_g = _sigmoid(gates[:, 1 * hidden:2 * hidden])
        g_g = jnp.tanh(gates[:, 2 * hidden:3 * hidden])
        o_g = _sigmoid(gates[:, 3 * hidden:4 * hidden])
        c = f_g * c + i_g * g_g
        h = o_g * jnp.tanh(c)
        hs_ref[pl.ds(r0, batch), :] = h.astype(hs_ref.dtype)
        return (h, c)

    h, c = lax.fori_loop(0, t_chunk, step, (h_sc[...], c_sc[...]),
                         unroll=True)
    h_sc[...] = h
    c_sc[...] = c


def lstm_recurrence_pallas(gx2d, whh_t, *, b_pad, t_chunk):
    rows_total, H4 = gx2d.shape
    H_pad = whh_t.shape[0]
    rows = t_chunk * b_pad
    assert rows_total % rows == 0
    grid = (rows_total // rows,)

    need = (2 * rows * H4 * 4            # gx chunk (f32, double-buffered)
            + 2 * H_pad * H4 * 2         # W_hh^T (bf16)
            + 2 * rows * H_pad * 2       # hs chunk out (bf16)
            + 2 * b_pad * H_pad * 4)     # h/c scratch
    # TODO(synk): mark the W_hh^T spec pipeline_mode=pl.Buffered(1) (its
    # index_map is constant) if single-buffering is needed for VMEM headroom.

    grid_spec = pltpu.PrefetchScalarGridSpec(
        num_scalar_prefetch=0,
        grid=grid,
        in_specs=[
            pl.BlockSpec((rows, H4), lambda i: (i, 0)),      # gx chunk
            pl.BlockSpec((H_pad, H4), lambda i: (0, 0)),     # W_hh^T
        ],
        out_specs=pl.BlockSpec((rows, H_pad), lambda i: (i, 0)),
        scratch_shapes=[
            pltpu.VMEM((b_pad, H_pad), jnp.float32),         # h state
            pltpu.VMEM((b_pad, H_pad), jnp.float32),         # c state
        ],
    )
    return pl.pallas_call(
        _lstm_recurrence_kernel,
        out_shape=jax.ShapeDtypeStruct((rows_total, H_pad), jnp.bfloat16),
        grid_spec=grid_spec,
        compiler_params=pltpu.CompilerParams(
            # h/c carry through VMEM scratch -> time-chunk axis MUST stay
            # sequential.  TODO(synk): on v7x with B_pad>=32, add a leading
            # 'parallel' batch-block axis (per-core h/c state) for the 2nd TC.
            dimension_semantics=("arbitrary",),
            vmem_limit_bytes=_vmem_limit(need)),
    )(gx2d, whh_t)


# ----------------------------------------------------------------------------
# Model wrapper.
# ----------------------------------------------------------------------------
class DecoderRNNPallas:
    """JAX/Pallas port of the PyTorch DecoderRNN forward (num_layers=1)."""

    def __init__(self, embed_size, hidden_size, vocab_size, key, t_chunk=8):
        self.embed_size = embed_size
        self.hidden_size = hidden_size
        self.vocab_size = vocab_size
        self.t_chunk = t_chunk

        ks = jax.random.split(key, 7)
        s = 1.0 / np.sqrt(hidden_size)
        # Deterministic synthetic parameters, PyTorch layout ([i,f,g,o] gates).
        self.embedding = jax.random.normal(
            ks[0], (vocab_size, embed_size), jnp.float32)
        self.w_ih = jax.random.uniform(
            ks[1], (4 * hidden_size, embed_size), jnp.float32, -s, s)
        self.w_hh = jax.random.uniform(
            ks[2], (4 * hidden_size, hidden_size), jnp.float32, -s, s)
        self.b_ih = jax.random.uniform(
            ks[3], (4 * hidden_size,), jnp.float32, -s, s)
        self.b_hh = jax.random.uniform(
            ks[4], (4 * hidden_size,), jnp.float32, -s, s)
        self.w_fc = jax.random.uniform(
            ks[5], (vocab_size, hidden_size), jnp.float32, -s, s)
        self.b_fc = jax.random.uniform(
            ks[6], (vocab_size,), jnp.float32, -s, s)

        self._prep_kernel_params()

    def _prep_kernel_params(self):
        """One-time weight prep: transpose, combine biases, pad each gate
        block to 128-lane boundaries, cast matmul operands to bf16 (f32
        accumulation is requested inside the kernels).  Zero padding keeps the
        LSTM math exact: padded hidden units stay identically zero."""
        E, H, V = self.embed_size, self.hidden_size, self.vocab_size
        self.E_pad = E_pad = _round_up(E, 128)
        self.H_pad = H_pad = _round_up(H, 128)
        self.V_pad = V_pad = _round_up(V, 128)

        def pad_gate_mat(w, in_dim, in_pad):
            # w: (4H, in_dim) -> gate-block padded (4*H_pad, in_pad)
            w4 = w.reshape(4, H, in_dim)
            out = jnp.zeros((4, H_pad, in_pad), jnp.float32)
            out = out.at[:, :H, :in_dim].set(w4)
            return out.reshape(4 * H_pad, in_pad)

        self.k_wih_t = pad_gate_mat(self.w_ih, E, E_pad).T.astype(jnp.bfloat16)
        self.k_whh_t = pad_gate_mat(self.w_hh, H, H_pad).T.astype(jnp.bfloat16)

        b = (self.b_ih + self.b_hh).reshape(4, H)
        self.k_b = (jnp.zeros((4, H_pad), jnp.float32)
                    .at[:, :H].set(b).reshape(1, 4 * H_pad))

        self.k_wfc_t = (jnp.zeros((V_pad, H_pad), jnp.float32)
                        .at[:V, :H].set(self.w_fc)).T.astype(jnp.bfloat16)
        self.k_bfc = (jnp.zeros((1, V_pad), jnp.float32)
                      .at[0, :V].set(self.b_fc))

    def forward(self, features, captions):
        # features: (B, E) float32; captions: (B, T) int32 -> logits (B, T, V)
        B = features.shape[0]
        T_seq = captions.shape[1]                 # 1 feature step + (T-1) words
        E, V = self.embed_size, self.vocab_size
        B_pad = _round_up(max(B, 1), 16)          # full bf16 sublane packing
        T_pad = _round_up(T_seq, self.t_chunk)

        # Build the padded, time-major, bf16 input slab directly from the
        # embedding gather (no extra concat/transpose full-array passes).
        cap_emb = jnp.take(self.embedding, captions[:, :-1], axis=0)  # (B,T-1,E)
        x = jnp.zeros((T_pad, B_pad, self.E_pad), jnp.bfloat16)
        x = x.at[0, :B, :E].set(features.astype(jnp.bfloat16))
        x = x.at[1:T_seq, :B, :E].set(
            jnp.transpose(cap_emb, (1, 0, 2)).astype(jnp.bfloat16))
        x2d = x.reshape(T_pad * B_pad, self.E_pad)

        # (1) Full-sequence input projection: parallel tiled bf16 MXU matmul.
        gx2d = matmul_bias_pallas(x2d, self.k_wih_t, self.k_b,
                                  out_dtype=jnp.float32)
        # (2) Sequential LSTM recurrence (h/c carried across time chunks).
        hs2d = lstm_recurrence_pallas(gx2d, self.k_whh_t,
                                      b_pad=B_pad, t_chunk=self.t_chunk)
        # (3) Full-sequence FC projection: parallel tiled bf16 matmul, V tiled.
        logits2d = matmul_bias_pallas(hs2d, self.k_wfc_t, self.k_bfc,
                                      out_dtype=jnp.float32)

        logits = logits2d.reshape(T_pad, B_pad, self.V_pad)[:T_seq, :B, :V]
        return jnp.transpose(logits, (1, 0, 2))

    def forward_reference(self, features, captions):
        """Pure-JAX f32 reference (lax.scan) mirroring torch.nn.LSTM."""
        cap_emb = jnp.take(self.embedding, captions[:, :-1], axis=0)
        inputs = jnp.concatenate([features[:, None, :], cap_emb], axis=1)
        B = features.shape[0]
        H = self.hidden_size

        def step(carry, x_t):
            h, c = carry
            gates = (x_t @ self.w_ih.T + self.b_ih
                     + h @ self.w_hh.T + self.b_hh)
            i = jax.nn.sigmoid(gates[:, 0 * H:1 * H])
            f = jax.nn.sigmoid(gates[:, 1 * H:2 * H])
            g = jnp.tanh(gates[:, 2 * H:3 * H])
            o = jax.nn.sigmoid(gates[:, 3 * H:4 * H])
            c = f * c + i * g
            h = o * jnp.tanh(c)
            return (h, c), h

        h0 = jnp.zeros((B, H), jnp.float32)
        c0 = jnp.zeros((B, H), jnp.float32)
        _, hs = lax.scan(step, (h0, c0), jnp.transpose(inputs, (1, 0, 2)))
        outs = jnp.einsum('tbh,vh->tbv', hs, self.w_fc) + self.b_fc
        return jnp.transpose(outs, (1, 0, 2))


if __name__ == "__main__":
    key = jax.random.PRNGKey(0)
    k_param, k_feat, k_cap = jax.random.split(key, 3)

    B, T_cap = 2, 16          # captions length 16 -> LSTM sequence length 16
    E, H, V = 32, 32, 64      # embed, hidden, vocab (small demo sizes)

    # t_chunk=8 -> recurrence grid (2,), exercising the cross-chunk h/c carry.
    model = DecoderRNNPallas(E, H, V, k_param, t_chunk=8)

    features = jax.random.normal(k_feat, (B, E), jnp.float32)
    captions = jax.random.randint(k_cap, (B, T_cap), 0, V, jnp.int32)

    out = jax.block_until_ready(model.forward(features, captions))
    ref = jax.block_until_ready(model.forward_reference(features, captions))

    # bf16 MXU operands vs f32 reference -> loosened tolerance (per review).
    np.testing.assert_allclose(np.asarray(out), np.asarray(ref),
                               rtol=5e-2, atol=5e-2)
    assert out.shape == (B, T_cap, V)
    print("KERNEL_OK")
</pallas_src>

<mosaic_0001>
module attributes {stable_mosaic.version = 11 : i64} {
  func.func @_matmul_bias_kernel(%arg0: i32, %arg1: i32, %arg2: i32, %arg3: memref<256x128xbf16, #tpu.memory_space<vmem>>, %arg4: memref<128x512xbf16, #tpu.memory_space<vmem>>, %arg5: memref<1x512xf32, #tpu.memory_space<vmem>>, %arg6: memref<256x512xf32, #tpu.memory_space<vmem>>, %arg7: memref<256x512xf32, #tpu.memory_space<vmem>>) attributes {dimension_semantics = [#tpu.dimension_semantics<parallel>, #tpu.dimension_semantics<parallel>, #tpu.dimension_semantics<arbitrary>], iteration_bounds = array<i64: 1, 1, 1>, scalar_prefetch = 0 : i64, scratch_operands = 1 : i64, tpu.core_type = #tpu.core_type<tc>, window_params = [{transform_indices = @transform_0, window_bounds = array<i64: 256, 128>}, {transform_indices = @transform_1, window_bounds = array<i64: 128, 512>}, {transform_indices = @transform_2, window_bounds = array<i64: 1, 512>}, {transform_indices = @transform_3, window_bounds = array<i64: 256, 512>}]} {
    %c0_i32 = arith.constant 0 : i32
    %0 = arith.cmpi eq, %arg2, %c0_i32 : i32
    %1 = arith.extui %0 : i1 to i32
    %c0_i32_0 = arith.constant 0 : i32
    %2 = arith.cmpi ne, %1, %c0_i32_0 : i32
    scf.if %2 {
      %cst_10 = arith.constant 0.000000e+00 : f32
      %12 = vector.broadcast %cst_10 : f32 to vector<256x512xf32>
      %c0_11 = arith.constant 0 : index
      %c0_12 = arith.constant 0 : index
      %13 = vector.load %arg7[%c0_11, %c0_12] : memref<256x512xf32, #tpu.memory_space<vmem>>, vector<256x512xf32>
      tpu.vector_store %arg7[%c0_11, %c0_12], %12 {strides = array<i32>} : memref<256x512xf32, #tpu.memory_space<vmem>>, vector<256x512xf32>,
    } else {
    }
    %c0 = arith.constant 0 : index
    %c0_1 = arith.constant 0 : index
    %3 = vector.load %arg7[%c0, %c0_1] : memref<256x512xf32, #tpu.memory_space<vmem>>, vector<256x512xf32>
    %c0_2 = arith.constant 0 : index
    %c0_3 = arith.constant 0 : index
    %4 = vector.load %arg3[%c0_2, %c0_3] : memref<256x128xbf16, #tpu.memory_space<vmem>>, vector<256x128xbf16>
    %c0_4 = arith.constant 0 : index
    %c0_5 = arith.constant 0 : index
    %5 = vector.load %arg4[%c0_4, %c0_5] : memref<128x512xbf16, #tpu.memory_space<vmem>>, vector<128x512xbf16>
    %cst = arith.constant dense<0.000000e+00> : vector<256x512xf32>
    %6 = tpu.matmul %4, %5, %cst {dimension_numbers = #tpu.dot_dimension_numbers<[1], [0], [0], [1], [0, 0, 1, 1], [], []>} : vector<256x128xbf16>, vector<128x512xbf16>, vector<256x512xf32> -> vector<256x512xf32>
    %7 = arith.addf %3, %6 : vector<256x512xf32>
    %c0_6 = arith.constant 0 : index
    %c0_7 = arith.constant 0 : index
    %8 = vector.load %arg7[%c0_6, %c0_7] : memref<256x512xf32, #tpu.memory_space<vmem>>, vector<256x512xf32>
    tpu.vector_store %arg7[%c0_6, %c0_7], %7 {strides = array<i32>} : memref<256x512xf32, #tpu.memory_space<vmem>>, vector<256x512xf32>,
    %c0_i32_8 = arith.constant 0 : i32
    %9 = arith.cmpi eq, %arg2, %c0_i32_8 : i32
    %10 = arith.extui %9 : i1 to i32
    %c0_i32_9 = arith.constant 0 : i32
    %11 = arith.cmpi ne, %10, %c0_i32_9 : i32
    scf.if %11 {
      %c0_10 = arith.constant 0 : index
      %c0_11 = arith.constant 0 : index
      %12 = vector.load %arg7[%c0_10, %c0_11] : memref<256x512xf32, #tpu.memory_space<vmem>>, vector<256x512xf32>
      %c0_12 = arith.constant 0 : index
      %c0_13 = arith.constant 0 : index
      %13 = vector.load %arg5[%c0_12, %c0_13] : memref<1x512xf32, #tpu.memory_space<vmem>>, vector<1x512xf32>
      %14 = vector.broadcast %13 : vector<1x512xf32> to vector<256x512xf32>
      %15 = arith.addf %12, %14 : vector<256x512xf32>
      %c0_14 = arith.constant 0 : index
      %c0_15 = arith.constant 0 : index
      %16 = vector.load %arg6[%c0_14, %c0_15] : memref<256x512xf32, #tpu.memory_space<vmem>>, vector<256x512xf32>
      tpu.vector_store %arg6[%c0_14, %c0_15], %15 {strides = array<i32>} : memref<256x512xf32, #tpu.memory_space<vmem>>, vector<256x512xf32>,
    } else {
    }
    return
  }
  func.func @transform_0(%arg0: i32, %arg1: i32, %arg2: i32) -> (i32, i32) {
    %c0_i32 = arith.constant 0 : i32
    return %arg0, %arg2 : i32, i32
  }
  func.func @transform_1(%arg0: i32, %arg1: i32, %arg2: i32) -> (i32, i32) {
    %c0_i32 = arith.constant 0 : i32
    return %arg2, %arg1 : i32, i32
  }
  func.func @transform_2(%arg0: i32, %arg1: i32, %arg2: i32) -> (i32, i32) {
    %c0_i32 = arith.constant 0 : i32
    %c0_i32_0 = arith.constant 0 : i32
    return %c0_i32, %arg1 : i32, i32
  }
  func.func @transform_3(%arg0: i32, %arg1: i32, %arg2: i32) -> (i32, i32) {
    %c0_i32 = arith.constant 0 : i32
    return %arg0, %arg1 : i32, i32
  }
}

</mosaic_0001>

<llo_original>
// kernel: tpu_custom_call.1
$region0: #{tpu_custom_call.1}
  #allocation0 [shape = 'u32[]', space=smem, size = 0x4, offset = 0x4, fixed_abs, tag = 'smem constant byte address 0x4 - core index']
  #allocation1 [shape = 'u32[72,128]{1,0:T(1,128)}', space=vmem, size = 0x9000, scoped, tag = 'internal scratch']
  #allocation2 [shape = 'f32[256,512]{1,0:T(8,128)}', space=vmem, size = 0x80000, scoped, tag = 'scratch operand']
  %s0 = inlined_call_operand.hbm [shape: bf16[256,128], index: 0, kind: input, shape index: {}]
  %s1 = inlined_call_operand.hbm [shape: bf16[128,512], index: 1, kind: input, shape index: {}]
  %s2 = inlined_call_operand.hbm [shape: f32[1,512], index: 2, kind: input, shape index: {}]
  %s3 = inlined_call_operand.hbm [shape: f32[256,512], index: 3, kind: output, shape index: {}]
  %s4 = sld [smem:[#allocation0]]
  $region42: #{tpu_custom_call.1} parent=0
    _
  %s6 = ssub.s32 1, %s4
  %s7 = scalar_select 0, %s6, %s4
  $region1: #{tpu_custom_call.1} parent=0
    #allocation3 [shape = 'u8[65536]{0}', space=vmem, size = 0x10000, scoped, tag = 'input window, operand 0, single buffered']
    #allocation4 [shape = 's32[1]{0}', space=sflag, size = 0x4, scoped, tag = 'scoped memory for tpu_custom_call.1']
    #allocation5 [shape = 's32[1]{0}', space=sflag, size = 0x4, scoped, tag = 'scoped memory for tpu_custom_call.1']
    #allocation6 [shape = 'u8[131072]{0}', space=vmem, size = 0x20000, scoped, tag = 'input window, operand 1, single buffered']
    #allocation7 [shape = 's32[1]{0}', space=sflag, size = 0x4, scoped, tag = 'scoped memory for tpu_custom_call.1']
    #allocation8 [shape = 'u8[2048]{0}', space=vmem, size = 0x800, scoped, tag = 'input window, operand 2, single buffered']
    #allocation9 [shape = 'u8[524288]{0}', space=vmem, size = 0x80000, scoped, tag = 'output window, operand 0, single buffered']
    %8 = vsyncpa [#allocation4], 0
    %9 = vsyncpa [#allocation7], 0
    %10 = vsyncpa [#allocation5], 0
    // Predicated region
    $region2: #{tpu_custom_call.1} parent=1 // pred_check
      _
    $region3: #{tpu_custom_call.1} parent=1 // pred_check_branch
      %12 = sbr.rel (0) target = $region5
    $region4: #{tpu_custom_call.1} parent=1 // pred_region
      %14 = vsyncadd [#allocation4], 0
      %s15 = sshll.u32 %s0, 4
      %s16 = int_to_ptr.hbm [resolvable:$true] %s15
      %s17 = sshll.u32 [#allocation3], 4
      %s18 = int_to_ptr.vmem [resolvable:$true] %s17
      %23 = dma.hbm_to_vmem [thread:$0]  %s16, 2048, %s18, [#allocation4], 64, 64, 4
    $region5: #{tpu_custom_call.1} parent=1 // pred_fallthru
      _
    // Predicated region
    $region6: #{tpu_custom_call.1} parent=1 // pred_check
      _
    $region7: #{tpu_custom_call.1} parent=1 // pred_check_branch
      %25 = sbr.rel (0) target = $region9
    $region8: #{tpu_custom_call.1} parent=1 // pred_region
      %27 = vsyncadd [#allocation7], 0
      %s28 = sshll.u32 %s1, 4
      %s29 = int_to_ptr.hbm [resolvable:$true] %s28
      %s30 = sshll.u32 [#allocation6], 4
      %s31 = int_to_ptr.vmem [resolvable:$true] %s30
      %36 = dma.hbm_to_vmem [thread:$0]  %s29, 4096, %s31, [#allocation7], 256, 256, 16
    $region9: #{tpu_custom_call.1} parent=1 // pred_fallthru
      _
    // Predicated region
    $region10: #{tpu_custom_call.1} parent=1 // pred_check
      _
    $region11: #{tpu_custom_call.1} parent=1 // pred_check_branch
      %38 = sbr.rel (0) target = $region13
    $region12: #{tpu_custom_call.1} parent=1 // pred_region
      %40 = vsyncadd [#allocation7], 0
      %s42 = sshll.u32 %s2, 4
      %s43 = int_to_ptr.hbm [resolvable:$true] %s42
      %s44 = sshll.u32 [#allocation8], 4
      %s45 = int_to_ptr.vmem [resolvable:$true] %s44
      %47 = dma.hbm_to_vmem [thread:$0]  %s43, 64, %s45, [#allocation7]
    $region13: #{tpu_custom_call.1} parent=1 // pred_fallthru
      _
    // Predicated region
    $region14: #{tpu_custom_call.1} parent=1 // pred_check
      _
    $region15: #{tpu_custom_call.1} parent=1 // pred_check_branch
      %49 = sbr.rel (0) target = $region17
    $region16: #{tpu_custom_call.1} parent=1 // pred_region
      %51 = dma.done [#allocation4], 2048
    $region17: #{tpu_custom_call.1} parent=1 // pred_fallthru
      _
    // Predicated region
    $region18: #{tpu_custom_call.1} parent=1 // pred_check
      _
    $region19: #{tpu_custom_call.1} parent=1 // pred_check_branch
      %53 = sbr.rel (0) target = $region21
    $region20: #{tpu_custom_call.1} parent=1 // pred_region
      %55 = dma.done [#allocation7], 4096
    $region21: #{tpu_custom_call.1} parent=1 // pred_fallthru
      _
    // Predicated region
    $region22: #{tpu_custom_call.1} parent=1 // pred_check
      _
    $region23: #{tpu_custom_call.1} parent=1 // pred_check_branch
      %57 = sbr.rel (0) target = $region25
    $region24: #{tpu_custom_call.1} parent=1 // pred_region
      %59 = dma.done [#allocation7], 64
    $region25: #{tpu_custom_call.1} parent=1 // pred_fallthru
      _
    %p60 = scmp.eq.s32.totalorder 0, 0
    // Predicated region
    $region26: #{tpu_custom_call.1} parent=1 // pred_check
      %p61 = pneg %p60
    $region27: #{tpu_custom_call.1} parent=1 // pred_check_branch
      %63 = sbr.rel (%p61) target = $region29
    $region28: #{tpu_custom_call.1} parent=1 // pred_region
      %64 = vst [vmem:[#allocation2] sm:$0xff] 0.0
      %65 = vst [vmem:[#allocation2 + $0x8] sm:$0xff] 0.0
      %66 = vst [vmem:[#allocation2 + $0x10] sm:$0xff] 0.0
      %67 = vst [vmem:[#allocation2 + $0x18] sm:$0xff] 0.0
      %68 = vst [vmem:[#allocation2 + $0x20] sm:$0xff] 0.0
      %69 = vst [vmem:[#allocation2 + $0x28] sm:$0xff] 0.0
      %70 = vst [vmem:[#allocation2 + $0x30] sm:$0xff] 0.0
      %71 = vst [vmem:[#allocation2 + $0x38] sm:$0xff] 0.0
      %72 = vst [vmem:[#allocation2 + $0x40] sm:$0xff] 0.0
      %73 = vst [vmem:[#allocation2 + $0x48] sm:$0xff] 0.0
      %74 = vst [vmem:[#allocation2 + $0x50] sm:$0xff] 0.0
      %75 = vst [vmem:[#allocation2 + $0x58] sm:$0xff] 0.0
      %76 = vst [vmem:[#allocation2 + $0x60] sm:$0xff] 0.0
      %77 = vst [vmem:[#allocation2 + $0x68] sm:$0xff] 0.0
      %78 = vst [vmem:[#allocation2 + $0x70] sm:$0xff] 0.0
      %79 = vst [vmem:[#allocation2 + $0x78] sm:$0xff] 0.0
      %80 = vst [vmem:[#allocation2 + $0x80] sm:$0xff] 0.0
      %81 = vst [vmem:[#allocation2 + $0x88] sm:$0xff] 0.0
      %82 = vst [vmem:[#allocation2 + $0x90] sm:$0xff] 0.0
      %83 = vst [vmem:[#allocation2 + $0x98] sm:$0xff] 0.0
      %84 = vst [vmem:[#allocation2 + $0xa0] sm:$0xff] 0.0
      %85 = vst [vmem:[#allocation2 + $0xa8] sm:$0xff] 0.0
      %86 = vst [vmem:[#allocation2 + $0xb0] sm:$0xff] 0.0
      %87 = vst [vmem:[#allocation2 + $0xb8] sm:$0xff] 0.0
      %88 = vst [vmem:[#allocation2 + $0xc0] sm:$0xff] 0.0
      %89 = vst [vmem:[#allocation2 + $0xc8] sm:$0xff] 0.0
      %90 = vst [vmem:[#allocation2 + $0xd0] sm:$0xff] 0.0
      %91 = vst [vmem:[#allocation2 + $0xd8] sm:$0xff] 0.0
      %92 = vst [vmem:[#allocation2 + $0xe0] sm:$0xff] 0.0
      %93 = vst [vmem:[#allocation2 + $0xe8] sm:$0xff] 0.0
      %94 = vst [vmem:[#allocation2 + $0xf0] sm:$0xff] 0.0
      %95 = vst [vmem:[#allocation2 + $0xf8] sm:$0xff] 0.0
      %96 = vst [vmem:[#allocation2 + $0x100] sm:$0xff] 0.0
      %97 = vst [vmem:[#allocation2 + $0x108] sm:$0xff] 0.0
      %98 = vst [vmem:[#allocation2 + $0x110] sm:$0xff] 0.0
      %99 = vst [vmem:[#allocation2 + $0x118] sm:$0xff] 0.0
      %100 = vst [vmem:[#allocation2 + $0x120] sm:$0xff] 0.0
      %101 = vst [vmem:[#allocation2 + $0x128] sm:$0xff] 0.0
      %102 = vst [vmem:[#allocation2 + $0x130] sm:$0xff] 0.0
      %103 = vst [vmem:[#allocation2 + $0x138] sm:$0xff] 0.0
      %104 = vst [vmem:[#allocation2 + $0x140] sm:$0xff] 0.0
      %105 = vst [vmem:[#allocation2 + $0x148] sm:$0xff] 0.0
      %106 = vst [vmem:[#allocation2 + $0x150] sm:$0xff] 0.0
      %107 = vst [vmem:[#allocation2 + $0x158] sm:$0xff] 0.0
      %108 = vst [vmem:[#allocation2 + $0x160] sm:$0xff] 0.0
      %109 = vst [vmem:[#allocation2 + $0x168] sm:$0xff] 0.0
      %110 = vst [vmem:[#allocation2 + $0x170] sm:$0xff] 0.0
      %111 = vst [vmem:[#allocation2 + $0x178] sm:$0xff] 0.0
      %112 = vst [vmem:[#allocation2 + $0x180] sm:$0xff] 0.0
      %113 = vst [vmem:[#allocation2 + $0x188] sm:$0xff] 0.0
      %114 = vst [vmem:[#allocation2 + $0x190] sm:$0xff] 0.0
      %115 = vst [vmem:[#allocation2 + $0x198] sm:$0xff] 0.0
      %116 = vst [vmem:[#allocation2 + $0x1a0] sm:$0xff] 0.0
      %117 = vst [vmem:[#allocation2 + $0x1a8] sm:$0xff] 0.0
      %118 = vst [vmem:[#allocation2 + $0x1b0] sm:$0xff] 0.0
      %119 = vst [vmem:[#allocation2 + $0x1b8] sm:$0xff] 0.0
      %120 = vst [vmem:[#allocation2 + $0x1c0] sm:$0xff] 0.0
      %121 = vst [vmem:[#allocation2 + $0x1c8] sm:$0xff] 0.0
      %122 = vst [vmem:[#allocation2 + $0x1d0] sm:$0xff] 0.0
      %123 = vst [vmem:[#allocation2 + $0x1d8] sm:$0xff] 0.0
      %124 = vst [vmem:[#allocation2 + $0x1e0] sm:$0xff] 0.0
      %125 = vst [vmem:[#allocation2 + $0x1e8] sm:$0xff] 0.0
      %126 = vst [vmem:[#allocation2 + $0x1f0] sm:$0xff] 0.0
      %127 = vst [vmem:[#allocation2 + $0x1f8] sm:$0xff] 0.0
      %128 = vst [vmem:[#allocation2 + $0x200] sm:$0xff] 0.0
      %129 = vst [vmem:[#allocation2 + $0x208] sm:$0xff] 0.0
      %130 = vst [vmem:[#allocation2 + $0x210] sm:$0xff] 0.0
      %131 = vst [vmem:[#allocation2 + $0x218] sm:$0xff] 0.0
      %132 = vst [vmem:[#allocation2 + $0x220] sm:$0xff] 0.0
      %133 = vst [vmem:[#allocation2 + $0x228] sm:$0xff] 0.0
      %134 = vst [vmem:[#allocation2 + $0x230] sm:$0xff] 0.0
      %135 = vst [vmem:[#allocation2 + $0x238] sm:$0xff] 0.0
      %136 = vst [vmem:[#allocation2 + $0x240] sm:$0xff] 0.0
      %137 = vst [vmem:[#allocation2 + $0x248] sm:$0xff] 0.0
      %138 = vst [vmem:[#allocation2 + $0x250] sm:$0xff] 0.0
      %139 = vst [vmem:[#allocation2 + $0x258] sm:$0xff] 0.0
      %140 = vst [vmem:[#allocation2 + $0x260] sm:$0xff] 0.0
      %141 = vst [vmem:[#allocation2 + $0x268] sm:$0xff] 0.0
      %142 = vst [vmem:[#allocation2 + $0x270] sm:$0xff] 0.0
      %143 = vst [vmem:[#allocation2 + $0x278] sm:$0xff] 0.0
      %144 = vst [vmem:[#allocation2 + $0x280] sm:$0xff] 0.0
      %145 = vst [vmem:[#allocation2 + $0x288] sm:$0xff] 0.0
      %146 = vst [vmem:[#allocation2 + $0x290] sm:$0xff] 0.0
      %147 = vst [vmem:[#allocation2 + $0x298] sm:$0xff] 0.0
      %148 = vst [vmem:[#allocation2 + $0x2a0] sm:$0xff] 0.0
      %149 = vst [vmem:[#allocation2 + $0x2a8] sm:$0xff] 0.0
      %150 = vst [vmem:[#allocation2 + $0x2b0] sm:$0xff] 0.0
      %151 = vst [vmem:[#allocation2 + $0x2b8] sm:$0xff] 0.0
      %152 = vst [vmem:[#allocation2 + $0x2c0] sm:$0xff] 0.0
      %153 = vst [vmem:[#allocation2 + $0x2c8] sm:$0xff] 0.0
      %154 = vst [vmem:[#allocation2 + $0x2d0] sm:$0xff] 0.0
      %155 = vst [vmem:[#allocation2 + $0x2d8] sm:$0xff] 0.0
      %156 = vst [vmem:[#allocation2 + $0x2e0] sm:$0xff] 0.0
      %157 = vst [vmem:[#allocation2 + $0x2e8] sm:$0xff] 0.0
      %158 = vst [vmem:[#allocation2 + $0x2f0] sm:$0xff] 0.0
      %159 = vst [vmem:[#allocation2 + $0x2f8] sm:$0xff] 0.0
      %160 = vst [vmem:[#allocation2 + $0x300] sm:$0xff] 0.0
      %161 = vst [vmem:[#allocation2 + $0x308] sm:$0xff] 0.0
      %162 = vst [vmem:[#allocation2 + $0x310] sm:$0xff] 0.0
      %163 = vst [vmem:[#allocation2 + $0x318] sm:$0xff] 0.0
      %164 = vst [vmem:[#allocation2 + $0x320] sm:$0xff] 0.0
      %165 = vst [vmem:[#allocation2 + $0x328] sm:$0xff] 0.0
      %166 = vst [vmem:[#allocation2 + $0x330] sm:$0xff] 0.0
      %167 = vst [vmem:[#allocation2 + $0x338] sm:$0xff] 0.0
      %168 = vst [vmem:[#allocation2 + $0x340] sm:$0xff] 0.0
      %169 = vst [vmem:[#allocation2 + $0x348] sm:$0xff] 0.0
      %170 = vst [vmem:[#allocation2 + $0x350] sm:$0xff] 0.0
      %171 = vst [vmem:[#allocation2 + $0x358] sm:$0xff] 0.0
      %172 = vst [vmem:[#allocation2 + $0x360] sm:$0xff] 0.0
      %173 = vst [vmem:[#allocation2 + $0x368] sm:$0xff] 0.0
      %174 = vst [vmem:[#allocation2 + $0x370] sm:$0xff] 0.0
      %175 = vst [vmem:[#allocation2 + $0x378] sm:$0xff] 0.0
      %176 = vst [vmem:[#allocation2 + $0x380] sm:$0xff] 0.0
      %177 = vst [vmem:[#allocation2 + $0x388] sm:$0xff] 0.0
      %178 = vst [vmem:[#allocation2 + $0x390] sm:$0xff] 0.0
      %179 = vst [vmem:[#allocation2 + $0x398] sm:$0xff] 0.0
      %180 = vst [vmem:[#allocation2 + $0x3a0] sm:$0xff] 0.0
      %181 = vst [vmem:[#allocation2 + $0x3a8] sm:$0xff] 0.0
      %182 = vst [vmem:[#allocation2 + $0x3b0] sm:$0xff] 0.0
      %183 = vst [vmem:[#allocation2 + $0x3b8] sm:$0xff] 0.0
      %184 = vst [vmem:[#allocation2 + $0x3c0] sm:$0xff] 0.0
      %185 = vst [vmem:[#allocation2 + $0x3c8] sm:$0xff] 0.0
      %186 = vst [vmem:[#allocation2 + $0x3d0] sm:$0xff] 0.0
      %187 = vst [vmem:[#allocation2 + $0x3d8] sm:$0xff] 0.0
      %188 = vst [vmem:[#allocation2 + $0x3e0] sm:$0xff] 0.0
      %189 = vst [vmem:[#allocation2 + $0x3e8] sm:$0xff] 0.0
      %190 = vst [vmem:[#allocation2 + $0x3f0] sm:$0xff] 0.0
      %191 = vst [vmem:[#allocation2 + $0x3f8] sm:$0xff] 0.0
    $region29: #{tpu_custom_call.1} parent=1 // pred_fallthru
      _
    %v192 = vld [vmem:[#allocation2] sm:$0xff]
    %v193 = vld [vmem:[#allocation2 + $0x8] sm:$0xff]
    %v194 = vld [vmem:[#allocation2 + $0x10] sm:$0xff]
    %v195 = vld [vmem:[#allocation2 + $0x18] sm:$0xff]
    %v196 = vld [vmem:[#allocation2 + $0x20] sm:$0xff]
    %v197 = vld [vmem:[#allocation2 + $0x28] sm:$0xff]
    %v198 = vld [vmem:[#allocation2 + $0x30] sm:$0xff]
    %v199 = vld [vmem:[#allocation2 + $0x38] sm:$0xff]
    %v200 = vld [vmem:[#allocation2 + $0x40] sm:$0xff]
    %v201 = vld [vmem:[#allocation2 + $0x48] sm:$0xff]
    %v202 = vld [vmem:[#allocation2 + $0x50] sm:$0xff]
    %v203 = vld [vmem:[#allocation2 + $0x58] sm:$0xff]
    %v204 = vld [vmem:[#allocation2 + $0x60] sm:$0xff]
    %v205 = vld [vmem:[#allocation2 + $0x68] sm:$0xff]
    %v206 = vld [vmem:[#allocation2 + $0x70] sm:$0xff]
    %v207 = vld [vmem:[#allocation2 + $0x78] sm:$0xff]
    %v208 = vld [vmem:[#allocation2 + $0x80] sm:$0xff]
    %v209 = vld [vmem:[#allocation2 + $0x88] sm:$0xff]
    %v210 = vld [vmem:[#allocation2 + $0x90] sm:$0xff]
    %v211 = vld [vmem:[#allocation2 + $0x98] sm:$0xff]
    %v212 = vld [vmem:[#allocation2 + $0xa0] sm:$0xff]
    %v213 = vld [vmem:[#allocation2 + $0xa8] sm:$0xff]
    %v214 = vld [vmem:[#allocation2 + $0xb0] sm:$0xff]
    %v215 = vld [vmem:[#allocation2 + $0xb8] sm:$0xff]
    %v216 = vld [vmem:[#allocation2 + $0xc0] sm:$0xff]
    %v217 = vld [vmem:[#allocation2 + $0xc8] sm:$0xff]
    %v218 = vld [vmem:[#allocation2 + $0xd0] sm:$0xff]
    %v219 = vld [vmem:[#allocation2 + $0xd8] sm:$0xff]
    %v220 = vld [vmem:[#allocation2 + $0xe0] sm:$0xff]
    %v221 = vld [vmem:[#allocation2 + $0xe8] sm:$0xff]
    %v222 = vld [vmem:[#allocation2 + $0xf0] sm:$0xff]
    %v223 = vld [vmem:[#allocation2 + $0xf8] sm:$0xff]
    %v224 = vld [vmem:[#allocation2 + $0x100] sm:$0xff]
    %v225 = vld [vmem:[#allocation2 + $0x108] sm:$0xff]
    %v226 = vld [vmem:[#allocation2 + $0x110] sm:$0xff]
    %v227 = vld [vmem:[#allocation2 + $0x118] sm:$0xff]
    %v228 = vld [vmem:[#allocation2 + $0x120] sm:$0xff]
    %v229 = vld [vmem:[#allocation2 + $0x128] sm:$0xff]
    %v230 = vld [vmem:[#allocation2 + $0x130] sm:$0xff]
    %v231 = vld [vmem:[#allocation2 + $0x138] sm:$0xff]
    %v232 = vld [vmem:[#allocation2 + $0x140] sm:$0xff]
    %v233 = vld [vmem:[#allocation2 + $0x148] sm:$0xff]
    %v234 = vld [vmem:[#allocation2 + $0x150] sm:$0xff]
    %v235 = vld [vmem:[#allocation2 + $0x158] sm:$0xff]
    %v236 = vld [vmem:[#allocation2 + $0x160] sm:$0xff]
    %v237 = vld [vmem:[#allocation2 + $0x168] sm:$0xff]
    %v238 = vld [vmem:[#allocation2 + $0x170] sm:$0xff]
    %v239 = vld [vmem:[#allocation2 + $0x178] sm:$0xff]
    %v240 = vld [vmem:[#allocation2 + $0x180] sm:$0xff]
    %v241 = vld [vmem:[#allocation2 + $0x188] sm:$0xff]
    %v242 = vld [vmem:[#allocation2 + $0x190] sm:$0xff]
    %v243 = vld [vmem:[#allocation2 + $0x198] sm:$0xff]
    %v244 = vld [vmem:[#allocation2 + $0x1a0] sm:$0xff]
    %v245 = vld [vmem:[#allocation2 + $0x1a8] sm:$0xff]
    %v246 = vld [vmem:[#allocation2 + $0x1b0] sm:$0xff]
    %v247 = vld [vmem:[#allocation2 + $0x1b8] sm:$0xff]
    %v248 = vld [vmem:[#allocation2 + $0x1c0] sm:$0xff]
    %v249 = vld [vmem:[#allocation2 + $0x1c8] sm:$0xff]
    %v250 = vld [vmem:[#allocation2 + $0x1d0] sm:$0xff]
    %v251 = vld [vmem:[#allocation2 + $0x1d8] sm:$0xff]
    %v252 = vld [vmem:[#allocation2 + $0x1e0] sm:$0xff]
    %v253 = vld [vmem:[#allocation2 + $0x1e8] sm:$0xff]
    %v254 = vld [vmem:[#allocation2 + $0x1f0] sm:$0xff]
    %v255 = vld [vmem:[#allocation2 + $0x1f8] sm:$0xff]
    %v256 = vld [vmem:[#allocation2 + $0x200] sm:$0xff]
    %v257 = vld [vmem:[#allocation2 + $0x208] sm:$0xff]
    %v258 = vld [vmem:[#allocation2 + $0x210] sm:$0xff]
    %v259 = vld [vmem:[#allocation2 + $0x218] sm:$0xff]
    %v260 = vld [vmem:[#allocation2 + $0x220] sm:$0xff]
    %v261 = vld [vmem:[#allocation2 + $0x228] sm:$0xff]
    %v262 = vld [vmem:[#allocation2 + $0x230] sm:$0xff]
    %v263 = vld [vmem:[#allocation2 + $0x238] sm:$0xff]
    %v264 = vld [vmem:[#allocation2 + $0x240] sm:$0xff]
    %v265 = vld [vmem:[#allocation2 + $0x248] sm:$0xff]
    %v266 = vld [vmem:[#allocation2 + $0x250] sm:$0xff]
    %v267 = vld [vmem:[#allocation2 + $0x258] sm:$0xff]
    %v268 = vld [vmem:[#allocation2 + $0x260] sm:$0xff]
    %v269 = vld [vmem:[#allocation2 + $0x268] sm:$0xff]
    %v270 = vld [vmem:[#allocation2 + $0x270] sm:$0xff]
    %v271 = vld [vmem:[#allocation2 + $0x278] sm:$0xff]
    %v272 = vld [vmem:[#allocation2 + $0x280] sm:$0xff]
    %v273 = vld [vmem:[#allocation2 + $0x288] sm:$0xff]
    %v274 = vld [vmem:[#allocation2 + $0x290] sm:$0xff]
    %v275 = vld [vmem:[#allocation2 + $0x298] sm:$0xff]
    %v276 = vld [vmem:[#allocation2 + $0x2a0] sm:$0xff]
    %v277 = vld [vmem:[#allocation2 + $0x2a8] sm:$0xff]
    %v278 = vld [vmem:[#allocation2 + $0x2b0] sm:$0xff]
    %v279 = vld [vmem:[#allocation2 + $0x2b8] sm:$0xff]
    %v280 = vld [vmem:[#allocation2 + $0x2c0] sm:$0xff]
    %v281 = vld [vmem:[#allocation2 + $0x2c8] sm:$0xff]
    %v282 = vld [vmem:[#allocation2 + $0x2d0] sm:$0xff]
    %v283 = vld [vmem:[#allocation2 + $0x2d8] sm:$0xff]
    %v284 = vld [vmem:[#allocation2 + $0x2e0] sm:$0xff]
    %v285 = vld [vmem:[#allocation2 + $0x2e8] sm:$0xff]
    %v286 = vld [vmem:[#allocation2 + $0x2f0] sm:$0xff]
    %v287 = vld [vmem:[#allocation2 + $0x2f8] sm:$0xff]
    %v288 = vld [vmem:[#allocation2 + $0x300] sm:$0xff]
    %v289 = vld [vmem:[#allocation2 + $0x308] sm:$0xff]
    %v290 = vld [vmem:[#allocation2 + $0x310] sm:$0xff]
    %v291 = vld [vmem:[#allocation2 + $0x318] sm:$0xff]
    %v292 = vld [vmem:[#allocation2 + $0x320] sm:$0xff]
    %v293 = vld [vmem:[#allocation2 + $0x328] sm:$0xff]
    %v294 = vld [vmem:[#allocation2 + $0x330] sm:$0xff]
    %v295 = vld [vmem:[#allocation2 + $0x338] sm:$0xff]
    %v296 = vld [vmem:[#allocation2 + $0x340] sm:$0xff]
    %v297 = vld [vmem:[#allocation2 + $0x348] sm:$0xff]
    %v298 = vld [vmem:[#allocation2 + $0x350] sm:$0xff]
    %v299 = vld [vmem:[#allocation2 + $0x358] sm:$0xff]
    %v300 = vld [vmem:[#allocation2 + $0x360] sm:$0xff]
    %v301 = vld [vmem:[#allocation2 + $0x368] sm:$0xff]
    %v302 = vld [vmem:[#allocation2 + $0x370] sm:$0xff]
    %v303 = vld [vmem:[#allocation2 + $0x378] sm:$0xff]
    %v304 = vld [vmem:[#allocation2 + $0x380] sm:$0xff]
    %v305 = vld [vmem:[#allocation2 + $0x388] sm:$0xff]
    %v306 = vld [vmem:[#allocation2 + $0x390] sm:$0xff]
    %v307 = vld [vmem:[#allocation2 + $0x398] sm:$0xff]
    %v308 = vld [vmem:[#allocation2 + $0x3a0] sm:$0xff]
    %v309 = vld [vmem:[#allocation2 + $0x3a8] sm:$0xff]
    %v310 = vld [vmem:[#allocation2 + $0x3b0] sm:$0xff]
    %v311 = vld [vmem:[#allocation2 + $0x3b8] sm:$0xff]
    %v312 = vld [vmem:[#allocation2 + $0x3c0] sm:$0xff]
    %v313 = vld [vmem:[#allocation2 + $0x3c8] sm:$0xff]
    %v314 = vld [vmem:[#allocation2 + $0x3d0] sm:$0xff]
    %v315 = vld [vmem:[#allocation2 + $0x3d8] sm:$0xff]
    %v316 = vld [vmem:[#allocation2 + $0x3e0] sm:$0xff]
    %v317 = vld [vmem:[#allocation2 + $0x3e8] sm:$0xff]
    %v318 = vld [vmem:[#allocation2 + $0x3f0] sm:$0xff]
    %v319 = vld [vmem:[#allocation2 + $0x3f8] sm:$0xff]
    %v320 = vld [vmem:[#allocation3] sm:$0xf]
    %v321 = vld [vmem:[#allocation3 + $0x4] sm:$0xf]
    %v322 = vld [vmem:[#allocation3 + $0x8] sm:$0xf]
    %v323 = vld [vmem:[#allocation3 + $0xc] sm:$0xf]
    %v324 = vld [vmem:[#allocation3 + $0x10] sm:$0xf]
    %v325 = vld [vmem:[#allocation3 + $0x14] sm:$0xf]
    %v326 = vld [vmem:[#allocation3 + $0x18] sm:$0xf]
    %v327 = vld [vmem:[#allocation3 + $0x1c] sm:$0xf]
    %v328 = vld [vmem:[#allocation3 + $0x20] sm:$0xf]
    %v329 = vld [vmem:[#allocation3 + $0x24] sm:$0xf]
    %v330 = vld [vmem:[#allocation3 + $0x28] sm:$0xf]
    %v331 = vld [vmem:[#allocation3 + $0x2c] sm:$0xf]
    %v332 = vld [vmem:[#allocation3 + $0x30] sm:$0xf]
    %v333 = vld [vmem:[#allocation3 + $0x34] sm:$0xf]
    %v334 = vld [vmem:[#allocation3 + $0x38] sm:$0xf]
    %v335 = vld [vmem:[#allocation3 + $0x3c] sm:$0xf]
    %v336 = vld [vmem:[#allocation3 + $0x40] sm:$0xf]
    %v337 = vld [vmem:[#allocation3 + $0x44] sm:$0xf]
    %v338 = vld [vmem:[#allocation3 + $0x48] sm:$0xf]
    %v339 = vld [vmem:[#allocation3 + $0x4c] sm:$0xf]
    %v340 = vld [vmem:[#allocation3 + $0x50] sm:$0xf]
    %v341 = vld [vmem:[#allocation3 + $0x54] sm:$0xf]
    %v342 = vld [vmem:[#allocation3 + $0x58] sm:$0xf]
    %v343 = vld [vmem:[#allocation3 + $0x5c] sm:$0xf]
    %v344 = vld [vmem:[#allocation3 + $0x60] sm:$0xf]
    %v345 = vld [vmem:[#allocation3 + $0x64] sm:$0xf]
    %v346 = vld [vmem:[#allocation3 + $0x68] sm:$0xf]
    %v347 = vld [vmem:[#allocation3 + $0x6c] sm:$0xf]
    %v348 = vld [vmem:[#allocation3 + $0x70] sm:$0xf]
    %v349 = vld [vmem:[#allocation3 + $0x74] sm:$0xf]
    %v350 = vld [vmem:[#allocation3 + $0x78] sm:$0xf]
    %v351 = vld [vmem:[#allocation3 + $0x7c] sm:$0xf]
    %v352 = vld [vmem:[#allocation6] sm:$0xff]
    %v353 = vld [vmem:[#allocation6 + $0x8] sm:$0xff]
    %v354 = vld [vmem:[#allocation6 + $0x10] sm:$0xff]
    %v355 = vld [vmem:[#allocation6 + $0x18] sm:$0xff]
    %v356 = vld [vmem:[#allocation6 + $0x20] sm:$0xff]
    %v357 = vld [vmem:[#allocation6 + $0x28] sm:$0xff]
    %v358 = vld [vmem:[#allocation6 + $0x30] sm:$0xff]
    %v359 = vld [vmem:[#allocation6 + $0x38] sm:$0xff]
    %v360 = vld [vmem:[#allocation6 + $0x40] sm:$0xff]
    %v361 = vld [vmem:[#allocation6 + $0x48] sm:$0xff]
    %v362 = vld [vmem:[#allocation6 + $0x50] sm:$0xff]
    %v363 = vld [vmem:[#allocation6 + $0x58] sm:$0xff]
    %v364 = vld [vmem:[#allocation6 + $0x60] sm:$0xff]
    %v365 = vld [vmem:[#allocation6 + $0x68] sm:$0xff]
    %v366 = vld [vmem:[#allocation6 + $0x70] sm:$0xff]
    %v367 = vld [vmem:[#allocation6 + $0x78] sm:$0xff]
    %v368 = vld [vmem:[#allocation6 + $0x80] sm:$0xff]
    %v369 = vld [vmem:[#allocation6 + $0x88] sm:$0xff]
    %v370 = vld [vmem:[#allocation6 + $0x90] sm:$0xff]
    %v371 = vld [vmem:[#allocation6 + $0x98] sm:$0xff]
    %v372 = vld [vmem:[#allocation6 + $0xa0] sm:$0xff]
    %v373 = vld [vmem:[#allocation6 + $0xa8] sm:$0xff]
    %v374 = vld [vmem:[#allocation6 + $0xb0] sm:$0xff]
    %v375 = vld [vmem:[#allocation6 + $0xb8] sm:$0xff]
    %v376 = vld [vmem:[#allocation6 + $0xc0] sm:$0xff]
    %v377 = vld [vmem:[#allocation6 + $0xc8] sm:$0xff]
    %v378 = vld [vmem:[#allocation6 + $0xd0] sm:$0xff]
    %v379 = vld [vmem:[#allocation6 + $0xd8] sm:$0xff]
    %v380 = vld [vmem:[#allocation6 + $0xe0] sm:$0xff]
    %v381 = vld [vmem:[#allocation6 + $0xe8] sm:$0xff]
    %v382 = vld [vmem:[#allocation6 + $0xf0] sm:$0xff]
    %v383 = vld [vmem:[#allocation6 + $0xf8] sm:$0xff]
    %v416 = vunpack.c.l.b16 %v320
    %v417 = vunpack.c.l.b16 %v321
    %v418 = vunpack.c.l.b16 %v322
    %v419 = vunpack.c.l.b16 %v323
    %v420 = vunpack.c.l.b16 %v324
    %v421 = vunpack.c.l.b16 %v325
    %v422 = vunpack.c.l.b16 %v326
    %v423 = vunpack.c.l.b16 %v327
    %v424 = vunpack.c.l.b16 %v328
    %v425 = vunpack.c.l.b16 %v329
    %v426 = vunpack.c.l.b16 %v330
    %v427 = vunpack.c.l.b16 %v331
    %v428 = vunpack.c.l.b16 %v332
    %v429 = vunpack.c.l.b16 %v333
    %v430 = vunpack.c.l.b16 %v334
    %v431 = vunpack.c.l.b16 %v335
    %v432 = vunpack.c.l.b16 %v336
    %v433 = vunpack.c.l.b16 %v337
    %v434 = vunpack.c.l.b16 %v338
    %v435 = vunpack.c.l.b16 %v339
    %v436 = vunpack.c.l.b16 %v340
    %v437 = vunpack.c.l.b16 %v341
    %v438 = vunpack.c.l.b16 %v342
    %v439 = vunpack.c.l.b16 %v343
    %v440 = vunpack.c.l.b16 %v344
    %v441 = vunpack.c.l.b16 %v345
    %v442 = vunpack.c.l.b16 %v346
    %v443 = vunpack.c.l.b16 %v347
    %v444 = vunpack.c.l.b16 %v348
    %v445 = vunpack.c.l.b16 %v349
    %v446 = vunpack.c.l.b16 %v350
    %v447 = vunpack.c.l.b16 %v351
    %v448 = vpack.c.b16 %v417, %v416
    %v449 = vpack.c.b16 %v419, %v418
    %v450 = vpack.c.b16 %v421, %v420
    %v451 = vpack.c.b16 %v423, %v422
    %v452 = vpack.c.b16 %v425, %v424
    %v453 = vpack.c.b16 %v427, %v426
    %v454 = vpack.c.b16 %v429, %v428
    %v455 = vpack.c.b16 %v431, %v430
    %v456 = vpack.c.b16 %v433, %v432
    %v457 = vpack.c.b16 %v435, %v434
    %v458 = vpack.c.b16 %v437, %v436
    %v459 = vpack.c.b16 %v439, %v438
    %v460 = vpack.c.b16 %v441, %v440
    %v461 = vpack.c.b16 %v443, %v442
    %v462 = vpack.c.b16 %v445, %v444
    %v463 = vpack.c.b16 %v447, %v446
    %v512 = vunpack.c.l.b16 %v352
    %v513 = vunpack.c.h.b16 %v352
    %v514 = vunpack.c.l.b16 %v353
    %v515 = vunpack.c.h.b16 %v353
    %v516 = vunpack.c.l.b16 %v354
    %v517 = vunpack.c.h.b16 %v354
    %v518 = vunpack.c.l.b16 %v355
    %v519 = vunpack.c.h.b16 %v355
    %v520 = vunpack.c.l.b16 %v356
    %v521 = vunpack.c.h.b16 %v356
    %v522 = vunpack.c.l.b16 %v357
    %v523 = vunpack.c.h.b16 %v357
    %v524 = vunpack.c.l.b16 %v358
    %v525 = vunpack.c.h.b16 %v358
    %v526 = vunpack.c.l.b16 %v359
    %v527 = vunpack.c.h.b16 %v359
    %v528 = vunpack.c.l.b16 %v360
    %v529 = vunpack.c.h.b16 %v360
    %v530 = vunpack.c.l.b16 %v361
    %v531 = vunpack.c.h.b16 %v361
    %v532 = vunpack.c.l.b16 %v362
    %v533 = vunpack.c.h.b16 %v362
    %v534 = vunpack.c.l.b16 %v363
    %v535 = vunpack.c.h.b16 %v363
    %v536 = vunpack.c.l.b16 %v364
    %v537 = vunpack.c.h.b16 %v364
    %v538 = vunpack.c.l.b16 %v365
    %v539 = vunpack.c.h.b16 %v365
    %v540 = vunpack.c.l.b16 %v366
    %v541 = vunpack.c.h.b16 %v366
    %v542 = vunpack.c.l.b16 %v367
    %v543 = vunpack.c.h.b16 %v367
    %v544 = vunpack.c.l.b16 %v368
    %v545 = vunpack.c.h.b16 %v368
    %v546 = vunpack.c.l.b16 %v369
    %v547 = vunpack.c.h.b16 %v369
    %v548 = vunpack.c.l.b16 %v370
    %v549 = vunpack.c.h.b16 %v370
    %v550 = vunpack.c.l.b16 %v371
    %v551 = vunpack.c.h.b16 %v371
    %v552 = vunpack.c.l.b16 %v372
    %v553 = vunpack.c.h.b16 %v372
    %v554 = vunpack.c.l.b16 %v373
    %v555 = vunpack.c.h.b16 %v373
    %v556 = vunpack.c.l.b16 %v374
    %v557 = vunpack.c.h.b16 %v374
    %v558 = vunpack.c.l.b16 %v375
    %v559 = vunpack.c.h.b16 %v375
    %v560 = vunpack.c.l.b16 %v376
    %v561 = vunpack.c.h.b16 %v376
    %v562 = vunpack.c.l.b16 %v377
    %v563 = vunpack.c.h.b16 %v377
    %v564 = vunpack.c.l.b16 %v378
    %v565 = vunpack.c.h.b16 %v378
    %v566 = vunpack.c.l.b16 %v379
    %v567 = vunpack.c.h.b16 %v379
    %v568 = vunpack.c.l.b16 %v380
    %v569 = vunpack.c.h.b16 %v380
    %v570 = vunpack.c.l.b16 %v381
    %v571 = vunpack.c.h.b16 %v381
    %v572 = vunpack.c.l.b16 %v382
    %v573 = vunpack.c.h.b16 %v382
    %v574 = vunpack.c.l.b16 %v383
    %v575 = vunpack.c.h.b16 %v383
    %v576 = vpack.c.b16 %v516, %v512
    %v577 = vpack.c.b16 %v517, %v513
    %v578 = vpack.c.b16 %v518, %v514
    %v579 = vpack.c.b16 %v519, %v515
    %v580 = vpack.c.b16 %v524, %v520
    %v581 = vpack.c.b16 %v525, %v521
    %v582 = vpack.c.b16 %v526, %v522
    %v583 = vpack.c.b16 %v527, %v523
    %v584 = vpack.c.b16 %v532, %v528
    %v585 = vpack.c.b16 %v533, %v529
    %v586 = vpack.c.b16 %v534, %v530
    %v587 = vpack.c.b16 %v535, %v531
    %v588 = vpack.c.b16 %v540, %v536
    %v589 = vpack.c.b16 %v541, %v537
    %v590 = vpack.c.b16 %v542, %v538
    %v591 = vpack.c.b16 %v543, %v539
    %v592 = vpack.c.b16 %v548, %v544
    %v593 = vpack.c.b16 %v549, %v545
    %v594 = vpack.c.b16 %v550, %v546
    %v595 = vpack.c.b16 %v551, %v547
    %v596 = vpack.c.b16 %v556, %v552
    %v597 = vpack.c.b16 %v557, %v553
    %v598 = vpack.c.b16 %v558, %v554
    %v599 = vpack.c.b16 %v559, %v555
    %v600 = vpack.c.b16 %v564, %v560
    %v601 = vpack.c.b16 %v565, %v561
    %v602 = vpack.c.b16 %v566, %v562
    %v603 = vpack.c.b16 %v567, %v563
    %v604 = vpack.c.b16 %v572, %v568
    %v605 = vpack.c.b16 %v573, %v569
    %v606 = vpack.c.b16 %v574, %v570
    %v607 = vpack.c.b16 %v575, %v571
    %640 = vmatpush.bf16.msra.mxu0 %v604
    %641 = vmatpush.bf16.msra.mxu0 %v600
    %642 = vmatpush.bf16.msra.mxu0 %v596
    %643 = vmatpush.bf16.msra.mxu0 %v592
    %644 = vmatpush.bf16.msra.mxu0 %v588
    %645 = vmatpush.bf16.msra.mxu0 %v584
    %646 = vmatpush.bf16.msra.mxu0 %v580
    %647 = vmatpush.bf16.msra.mxu0 %v576
    %648 = vmatmul.bf16.gmra.mxu0 %v448
    %v649 = vpop.f32.mrf.mxu0
    %v650 = vadd.f32 0.0, %v649
    %v651 = vpop.f32.mrf.mxu0
    %v652 = vadd.f32 0.0, %v651
    %653 = vmatmul.bf16.gmra.mxu0 %v449
    %v654 = vpop.f32.mrf.mxu0
    %v655 = vadd.f32 0.0, %v654
    %v656 = vpop.f32.mrf.mxu0
    %v657 = vadd.f32 0.0, %v656
    %658 = vmatmul.bf16.gmra.mxu0 %v450
    %v659 = vpop.f32.mrf.mxu0
    %v660 = vadd.f32 0.0, %v659
    %v661 = vpop.f32.mrf.mxu0
    %v662 = vadd.f32 0.0, %v661
    %663 = vmatmul.bf16.gmra.mxu0 %v451
    %v664 = vpop.f32.mrf.mxu0
    %v665 = vadd.f32 0.0, %v664
    %v666 = vpop.f32.mrf.mxu0
    %v667 = vadd.f32 0.0, %v666
    %668 = vmatmul.bf16.gmra.mxu0 %v452
    %v669 = vpop.f32.mrf.mxu0
    %v670 = vadd.f32 0.0, %v669
    %v671 = vpop.f32.mrf.mxu0
    %v672 = vadd.f32 0.0, %v671
    %673 = vmatmul.bf16.gmra.mxu0 %v453
    %v674 = vpop.f32.mrf.mxu0
    %v675 = vadd.f32 0.0, %v674
    %v676 = vpop.f32.mrf.mxu0
    %v677 = vadd.f32 0.0, %v676
    %678 = vmatmul.bf16.gmra.mxu0 %v454
    %v679 = vpop.f32.mrf.mxu0
    %v680 = vadd.f32 0.0, %v679
    %v681 = vpop.f32.mrf.mxu0
    %v682 = vadd.f32 0.0, %v681
    %683 = vmatmul.bf16.gmra.mxu0 %v455
    %v684 = vpop.f32.mrf.mxu0
    %v685 = vadd.f32 0.0, %v684
    %v686 = vpop.f32.mrf.mxu0
    %v687 = vadd.f32 0.0, %v686
    %688 = vmatmul.bf16.gmra.mxu0 %v456
    %v689 = vpop.f32.mrf.mxu0
    %v690 = vadd.f32 0.0, %v689
    %v691 = vpop.f32.mrf.mxu0
    %v692 = vadd.f32 0.0, %v691
    %693 = vmatmul.bf16.gmra.mxu0 %v457
    %v694 = vpop.f32.mrf.mxu0
    %v695 = vadd.f32 0.0, %v694
    %v696 = vpop.f32.mrf.mxu0
    %v697 = vadd.f32 0.0, %v696
    %698 = vmatmul.bf16.gmra.mxu0 %v458
    %v699 = vpop.f32.mrf.mxu0
    %v700 = vadd.f32 0.0, %v699
    %v701 = vpop.f32.mrf.mxu0
    %v702 = vadd.f32 0.0, %v701
    %703 = vmatmul.bf16.gmra.mxu0 %v459
    %v704 = vpop.f32.mrf.mxu0
    %v705 = vadd.f32 0.0, %v704
    %v706 = vpop.f32.mrf.mxu0
    %v707 = vadd.f32 0.0, %v706
    %708 = vmatmul.bf16.gmra.mxu0 %v460
    %v709 = vpop.f32.mrf.mxu0
    %v710 = vadd.f32 0.0, %v709
    %v711 = vpop.f32.mrf.mxu0
    %v712 = vadd.f32 0.0, %v711
    %713 = vmatmul.bf16.gmra.mxu0 %v461
    %v714 = vpop.f32.mrf.mxu0
    %v715 = vadd.f32 0.0, %v714
    %v716 = vpop.f32.mrf.mxu0
    %v717 = vadd.f32 0.0, %v716
    %718 = vmatmul.bf16.gmra.mxu0 %v462
    %v719 = vpop.f32.mrf.mxu0
    %v720 = vadd.f32 0.0, %v719
    %v721 = vpop.f32.mrf.mxu0
    %v722 = vadd.f32 0.0, %v721
    %723 = vmatmul.bf16.gmra.mxu0 %v463
    %v724 = vpop.f32.mrf.mxu0
    %v725 = vadd.f32 0.0, %v724
    %v726 = vpop.f32.mrf.mxu0
    %v727 = vadd.f32 0.0, %v726
    %728 = vdwg.mxu0
    %729 = vmatpush.bf16.msra.mxu0 %v605
    %730 = vmatpush.bf16.msra.mxu0 %v601
    %731 = vmatpush.bf16.msra.mxu0 %v597
    %732 = vmatpush.bf16.msra.mxu0 %v593
    %733 = vmatpush.bf16.msra.mxu0 %v589
    %734 = vmatpush.bf16.msra.mxu0 %v585
    %735 = vmatpush.bf16.msra.mxu0 %v581
    %736 = vmatpush.bf16.msra.mxu0 %v577
    %737 = vmatmul.bf16.gmra.mxu0 %v448
    %v738 = vpop.f32.mrf.mxu0
    %v739 = vadd.f32 0.0, %v738
    %v740 = vpop.f32.mrf.mxu0
    %v741 = vadd.f32 0.0, %v740
    %742 = vmatmul.bf16.gmra.mxu0 %v449
    %v743 = vpop.f32.mrf.mxu0
    %v744 = vadd.f32 0.0, %v743
    %v745 = vpop.f32.mrf.mxu0
    %v746 = vadd.f32 0.0, %v745
    %747 = vmatmul.bf16.gmra.mxu0 %v450
    %v748 = vpop.f32.mrf.mxu0
    %v749 = vadd.f32 0.0, %v748
    %v750 = vpop.f32.mrf.mxu0
    %v751 = vadd.f32 0.0, %v750
    %752 = vmatmul.bf16.gmra.mxu0 %v451
    %v753 = vpop.f32.mrf.mxu0
    %v754 = vadd.f32 0.0, %v753
    %v755 = vpop.f32.mrf.mxu0
    %v756 = vadd.f32 0.0, %v755
    %757 = vmatmul.bf16.gmra.mxu0 %v452
    %v758 = vpop.f32.mrf.mxu0
    %v759 = vadd.f32 0.0, %v758
    %v760 = vpop.f32.mrf.mxu0
    %v761 = vadd.f32 0.0, %v760
    %762 = vmatmul.bf16.gmra.mxu0 %v453
    %v763 = vpop.f32.mrf.mxu0
    %v764 = vadd.f32 0.0, %v763
    %v765 = vpop.f32.mrf.mxu0
    %v766 = vadd.f32 0.0, %v765
    %767 = vmatmul.bf16.gmra.mxu0 %v454
    %v768 = vpop.f32.mrf.mxu0
    %v769 = vadd.f32 0.0, %v768
    %v770 = vpop.f32.mrf.mxu0
    %v771 = vadd.f32 0.0, %v770
    %772 = vmatmul.bf16.gmra.mxu0 %v455
    %v773 = vpop.f32.mrf.mxu0
    %v774 = vadd.f32 0.0, %v773
    %v775 = vpop.f32.mrf.mxu0
    %v776 = vadd.f32 0.0, %v775
    %777 = vmatmul.bf16.gmra.mxu0 %v456
    %v778 = vpop.f32.mrf.mxu0
    %v779 = vadd.f32 0.0, %v778
    %v780 = vpop.f32.mrf.mxu0
    %v781 = vadd.f32 0.0, %v780
    %782 = vmatmul.bf16.gmra.mxu0 %v457
    %v783 = vpop.f32.mrf.mxu0
    %v784 = vadd.f32 0.0, %v783
    %v785 = vpop.f32.mrf.mxu0
    %v786 = vadd.f32 0.0, %v785
    %787 = vmatmul.bf16.gmra.mxu0 %v458
    %v788 = vpop.f32.mrf.mxu0
    %v789 = vadd.f32 0.0, %v788
    %v790 = vpop.f32.mrf.mxu0
    %v791 = vadd.f32 0.0, %v790
    %792 = vmatmul.bf16.gmra.mxu0 %v459
    %v793 = vpop.f32.mrf.mxu0
    %v794 = vadd.f32 0.0, %v793
    %v795 = vpop.f32.mrf.mxu0
    %v796 = vadd.f32 0.0, %v795
    %797 = vmatmul.bf16.gmra.mxu0 %v460
    %v798 = vpop.f32.mrf.mxu0
    %v799 = vadd.f32 0.0, %v798
    %v800 = vpop.f32.mrf.mxu0
    %v801 = vadd.f32 0.0, %v800
    %802 = vmatmul.bf16.gmra.mxu0 %v461
    %v803 = vpop.f32.mrf.mxu0
    %v804 = vadd.f32 0.0, %v803
    %v805 = vpop.f32.mrf.mxu0
    %v806 = vadd.f32 0.0, %v805
    %807 = vmatmul.bf16.gmra.mxu0 %v462
    %v808 = vpop.f32.mrf.mxu0
    %v809 = vadd.f32 0.0, %v808
    %v810 = vpop.f32.mrf.mxu0
    %v811 = vadd.f32 0.0, %v810
    %812 = vmatmul.bf16.gmra.mxu0 %v463
    %v813 = vpop.f32.mrf.mxu0
    %v814 = vadd.f32 0.0, %v813
    %v815 = vpop.f32.mrf.mxu0
    %v816 = vadd.f32 0.0, %v815
    %817 = vdwg.mxu0
    %818 = vmatpush.bf16.msra.mxu0 %v606
    %819 = vmatpush.bf16.msra.mxu0 %v602
    %820 = vmatpush.bf16.msra.mxu0 %v598
    %821 = vmatpush.bf16.msra.mxu0 %v594
    %822 = vmatpush.bf16.msra.mxu0 %v590
    %823 = vmatpush.bf16.msra.mxu0 %v586
    %824 = vmatpush.bf16.msra.mxu0 %v582
    %825 = vmatpush.bf16.msra.mxu0 %v578
    %826 = vmatmul.bf16.gmra.mxu0 %v448
    %v827 = vpop.f32.mrf.mxu0
    %v828 = vadd.f32 0.0, %v827
    %v829 = vpop.f32.mrf.mxu0
    %v830 = vadd.f32 0.0, %v829
    %831 = vmatmul.bf16.gmra.mxu0 %v449
    %v832 = vpop.f32.mrf.mxu0
    %v833 = vadd.f32 0.0, %v832
    %v834 = vpop.f32.mrf.mxu0
    %v835 = vadd.f32 0.0, %v834
    %836 = vmatmul.bf16.gmra.mxu0 %v450
    %v837 = vpop.f32.mrf.mxu0
    %v838 = vadd.f32 0.0, %v837
    %v839 = vpop.f32.mrf.mxu0
    %v840 = vadd.f32 0.0, %v839
    %841 = vmatmul.bf16.gmra.mxu0 %v451
    %v842 = vpop.f32.mrf.mxu0
    %v843 = vadd.f32 0.0, %v842
    %v844 = vpop.f32.mrf.mxu0
    %v845 = vadd.f32 0.0, %v844
    %846 = vmatmul.bf16.gmra.mxu0 %v452
    %v847 = vpop.f32.mrf.mxu0
    %v848 = vadd.f32 0.0, %v847
    %v849 = vpop.f32.mrf.mxu0
    %v850 = vadd.f32 0.0, %v849
    %851 = vmatmul.bf16.gmra.mxu0 %v453
    %v852 = vpop.f32.mrf.mxu0
    %v853 = vadd.f32 0.0, %v852
    %v854 = vpop.f32.mrf.mxu0
    %v855 = vadd.f32 0.0, %v854
    %856 = vmatmul.bf16.gmra.mxu0 %v454
    %v857 = vpop.f32.mrf.mxu0
    %v858 = vadd.f32 0.0, %v857
    %v859 = vpop.f32.mrf.mxu0
    %v860 = vadd.f32 0.0, %v859
    %861 = vmatmul.bf16.gmra.mxu0 %v455
    %v862 = vpop.f32.mrf.mxu0
    %v863 = vadd.f32 0.0, %v862
    %v864 = vpop.f32.mrf.mxu0
    %v865 = vadd.f32 0.0, %v864
    %866 = vmatmul.bf16.gmra.mxu0 %v456
    %v867 = vpop.f32.mrf.mxu0
    %v868 = vadd.f32 0.0, %v867
    %v869 = vpop.f32.mrf.mxu0
    %v870 = vadd.f32 0.0, %v869
    %871 = vmatmul.bf16.gmra.mxu0 %v457
    %v872 = vpop.f32.mrf.mxu0
    %v873 = vadd.f32 0.0, %v872
    %v874 = vpop.f32.mrf.mxu0
    %v875 = vadd.f32 0.0, %v874
    %876 = vmatmul.bf16.gmra.mxu0 %v458
    %v877 = vpop.f32.mrf.mxu0
    %v878 = vadd.f32 0.0, %v877
    %v879 = vpop.f32.mrf.mxu0
    %v880 = vadd.f32 0.0, %v879
    %881 = vmatmul.bf16.gmra.mxu0 %v459
    %v882 = vpop.f32.mrf.mxu0
    %v883 = vadd.f32 0.0, %v882
    %v884 = vpop.f32.mrf.mxu0
    %v885 = vadd.f32 0.0, %v884
    %886 = vmatmul.bf16.gmra.mxu0 %v460
    %v887 = vpop.f32.mrf.mxu0
    %v888 = vadd.f32 0.0, %v887
    %v889 = vpop.f32.mrf.mxu0
    %v890 = vadd.f32 0.0, %v889
    %891 = vmatmul.bf16.gmra.mxu0 %v461
    %v892 = vpop.f32.mrf.mxu0
    %v893 = vadd.f32 0.0, %v892
    %v894 = vpop.f32.mrf.mxu0
    %v895 = vadd.f32 0.0, %v894
    %896 = vmatmul.bf16.gmra.mxu0 %v462
    %v897 = vpop.f32.mrf.mxu0
    %v898 = vadd.f32 0.0, %v897
    %v899 = vpop.f32.mrf.mxu0
    %v900 = vadd.f32 0.0, %v899
    %901 = vmatmul.bf16.gmra.mxu0 %v463
    %v902 = vpop.f32.mrf.mxu0
    %v903 = vadd.f32 0.0, %v902
    %v904 = vpop.f32.mrf.mxu0
    %v905 = vadd.f32 0.0, %v904
    %906 = vdwg.mxu0
    %907 = vmatpush.bf16.msra.mxu0 %v607
    %908 = vmatpush.bf16.msra.mxu0 %v603
    %909 = vmatpush.bf16.msra.mxu0 %v599
    %910 = vmatpush.bf16.msra.mxu0 %v595
    %911 = vmatpush.bf16.msra.mxu0 %v591
    %912 = vmatpush.bf16.msra.mxu0 %v587
    %913 = vmatpush.bf16.msra.mxu0 %v583
    %914 = vmatpush.bf16.msra.mxu0 %v579
    %915 = vmatmul.bf16.gmra.mxu0 %v448
    %v916 = vpop.f32.mrf.mxu0
    %v917 = vadd.f32 0.0, %v916
    %v918 = vpop.f32.mrf.mxu0
    %v919 = vadd.f32 0.0, %v918
    %920 = vmatmul.bf16.gmra.mxu0 %v449
    %v921 = vpop.f32.mrf.mxu0
    %v922 = vadd.f32 0.0, %v921
    %v923 = vpop.f32.mrf.mxu0
    %v924 = vadd.f32 0.0, %v923
    %925 = vmatmul.bf16.gmra.mxu0 %v450
    %v926 = vpop.f32.mrf.mxu0
    %v927 = vadd.f32 0.0, %v926
    %v928 = vpop.f32.mrf.mxu0
    %v929 = vadd.f32 0.0, %v928
    %930 = vmatmul.bf16.gmra.mxu0 %v451
    %v931 = vpop.f32.mrf.mxu0
    %v932 = vadd.f32 0.0, %v931
    %v933 = vpop.f32.mrf.mxu0
    %v934 = vadd.f32 0.0, %v933
    %935 = vmatmul.bf16.gmra.mxu0 %v452
    %v936 = vpop.f32.mrf.mxu0
    %v937 = vadd.f32 0.0, %v936
    %v938 = vpop.f32.mrf.mxu0
    %v939 = vadd.f32 0.0, %v938
    %940 = vmatmul.bf16.gmra.mxu0 %v453
    %v941 = vpop.f32.mrf.mxu0
    %v942 = vadd.f32 0.0, %v941
    %v943 = vpop.f32.mrf.mxu0
    %v944 = vadd.f32 0.0, %v943
    %945 = vmatmul.bf16.gmra.mxu0 %v454
    %v946 = vpop.f32.mrf.mxu0
    %v947 = vadd.f32 0.0, %v946
    %v948 = vpop.f32.mrf.mxu0
    %v949 = vadd.f32 0.0, %v948
    %950 = vmatmul.bf16.gmra.mxu0 %v455
    %v951 = vpop.f32.mrf.mxu0
    %v952 = vadd.f32 0.0, %v951
    %v953 = vpop.f32.mrf.mxu0
    %v954 = vadd.f32 0.0, %v953
    %955 = vmatmul.bf16.gmra.mxu0 %v456
    %v956 = vpop.f32.mrf.mxu0
    %v957 = vadd.f32 0.0, %v956
    %v958 = vpop.f32.mrf.mxu0
    %v959 = vadd.f32 0.0, %v958
    %960 = vmatmul.bf16.gmra.mxu0 %v457
    %v961 = vpop.f32.mrf.mxu0
    %v962 = vadd.f32 0.0, %v961
    %v963 = vpop.f32.mrf.mxu0
    %v964 = vadd.f32 0.0, %v963
    %965 = vmatmul.bf16.gmra.mxu0 %v458
    %v966 = vpop.f32.mrf.mxu0
    %v967 = vadd.f32 0.0, %v966
    %v968 = vpop.f32.mrf.mxu0
    %v969 = vadd.f32 0.0, %v968
    %970 = vmatmul.bf16.gmra.mxu0 %v459
    %v971 = vpop.f32.mrf.mxu0
    %v972 = vadd.f32 0.0, %v971
    %v973 = vpop.f32.mrf.mxu0
    %v974 = vadd.f32 0.0, %v973
    %975 = vmatmul.bf16.gmra.mxu0 %v460
    %v976 = vpop.f32.mrf.mxu0
    %v977 = vadd.f32 0.0, %v976
    %v978 = vpop.f32.mrf.mxu0
    %v979 = vadd.f32 0.0, %v978
    %980 = vmatmul.bf16.gmra.mxu0 %v461
    %v981 = vpop.f32.mrf.mxu0
    %v982 = vadd.f32 0.0, %v981
    %v983 = vpop.f32.mrf.mxu0
    %v984 = vadd.f32 0.0, %v983
    %985 = vmatmul.bf16.gmra.mxu0 %v462
    %v986 = vpop.f32.mrf.mxu0
    %v987 = vadd.f32 0.0, %v986
    %v988 = vpop.f32.mrf.mxu0
    %v989 = vadd.f32 0.0, %v988
    %990 = vmatmul.bf16.gmra.mxu0 %v463
    %v991 = vpop.f32.mrf.mxu0
    %v992 = vadd.f32 0.0, %v991
    %v993 = vpop.f32.mrf.mxu0
    %v994 = vadd.f32 0.0, %v993
    %995 = vdwg.mxu0
    %v996 = vadd.f32 %v192, %v650
    %v997 = vadd.f32 %v193, %v739
    %v998 = vadd.f32 %v194, %v828
    %v999 = vadd.f32 %v195, %v917
    %v1000 = vadd.f32 %v196, %v652
    %v1001 = vadd.f32 %v197, %v741
    %v1002 = vadd.f32 %v198, %v830
    %v1003 = vadd.f32 %v199, %v919
    %v1004 = vadd.f32 %v200, %v655
    %v1005 = vadd.f32 %v201, %v744
    %v1006 = vadd.f32 %v202, %v833
    %v1007 = vadd.f32 %v203, %v922
    %v1008 = vadd.f32 %v204, %v657
    %v1009 = vadd.f32 %v205, %v746
    %v1010 = vadd.f32 %v206, %v835
    %v1011 = vadd.f32 %v207, %v924
    %v1012 = vadd.f32 %v208, %v660
    %v1013 = vadd.f32 %v209, %v749
    %v1014 = vadd.f32 %v210, %v838
    %v1015 = vadd.f32 %v211, %v927
    %v1016 = vadd.f32 %v212, %v662
    %v1017 = vadd.f32 %v213, %v751
    %v1018 = vadd.f32 %v214, %v840
    %v1019 = vadd.f32 %v215, %v929
    %v1020 = vadd.f32 %v216, %v665
    %v1021 = vadd.f32 %v217, %v754
    %v1022 = vadd.f32 %v218, %v843
    %v1023 = vadd.f32 %v219, %v932
    %v1024 = vadd.f32 %v220, %v667
    %v1025 = vadd.f32 %v221, %v756
    %v1026 = vadd.f32 %v222, %v845
    %v1027 = vadd.f32 %v223, %v934
    %v1028 = vadd.f32 %v224, %v670
    %v1029 = vadd.f32 %v225, %v759
    %v1030 = vadd.f32 %v226, %v848
    %v1031 = vadd.f32 %v227, %v937
    %v1032 = vadd.f32 %v228, %v672
    %v1033 = vadd.f32 %v229, %v761
    %v1034 = vadd.f32 %v230, %v850
    %v1035 = vadd.f32 %v231, %v939
    %v1036 = vadd.f32 %v232, %v675
    %v1037 = vadd.f32 %v233, %v764
    %v1038 = vadd.f32 %v234, %v853
    %v1039 = vadd.f32 %v235, %v942
    %v1040 = vadd.f32 %v236, %v677
    %v1041 = vadd.f32 %v237, %v766
    %v1042 = vadd.f32 %v238, %v855
    %v1043 = vadd.f32 %v239, %v944
    %v1044 = vadd.f32 %v240, %v680
    %v1045 = vadd.f32 %v241, %v769
    %v1046 = vadd.f32 %v242, %v858
    %v1047 = vadd.f32 %v243, %v947
    %v1048 = vadd.f32 %v244, %v682
    %v1049 = vadd.f32 %v245, %v771
    %v1050 = vadd.f32 %v246, %v860
    %v1051 = vadd.f32 %v247, %v949
    %v1052 = vadd.f32 %v248, %v685
    %v1053 = vadd.f32 %v249, %v774
    %v1054 = vadd.f32 %v250, %v863
    %v1055 = vadd.f32 %v251, %v952
    %v1056 = vadd.f32 %v252, %v687
    %v1057 = vadd.f32 %v253, %v776
    %v1058 = vadd.f32 %v254, %v865
    %v1059 = vadd.f32 %v255, %v954
    %v1060 = vadd.f32 %v256, %v690
    %v1061 = vadd.f32 %v257, %v779
    %v1062 = vadd.f32 %v258, %v868
    %v1063 = vadd.f32 %v259, %v957
    %v1064 = vadd.f32 %v260, %v692
    %v1065 = vadd.f32 %v261, %v781
    %v1066 = vadd.f32 %v262, %v870
    %v1067 = vadd.f32 %v263, %v959
    %v1068 = vadd.f32 %v264, %v695
    %v1069 = vadd.f32 %v265, %v784
    %v1070 = vadd.f32 %v266, %v873
    %v1071 = vadd.f32 %v267, %v962
    %v1072 = vadd.f32 %v268, %v697
    %v1073 = vadd.f32 %v269, %v786
    %v1074 = vadd.f32 %v270, %v875
    %v1075 = vadd.f32 %v271, %v964
    %v1076 = vadd.f32 %v272, %v700
    %v1077 = vadd.f32 %v273, %v789
    %v1078 = vadd.f32 %v274, %v878
    %v1079 = vadd.f32 %v275, %v967
    %v1080 = vadd.f32 %v276, %v702
    %v1081 = vadd.f32 %v277, %v791
    %v1082 = vadd.f32 %v278, %v880
    %v1083 = vadd.f32 %v279, %v969
    %v1084 = vadd.f32 %v280, %v705
    %v1085 = vadd.f32 %v281, %v794
    %v1086 = vadd.f32 %v282, %v883
    %v1087 = vadd.f32 %v283, %v972
    %v1088 = vadd.f32 %v284, %v707
    %v1089 = vadd.f32 %v285, %v796
    %v1090 = vadd.f32 %v286, %v885
    %v1091 = vadd.f32 %v287, %v974
    %v1092 = vadd.f32 %v288, %v710
    %v1093 = vadd.f32 %v289, %v799
    %v1094 = vadd.f32 %v290, %v888
    %v1095 = vadd.f32 %v291, %v977
    %v1096 = vadd.f32 %v292, %v712
    %v1097 = vadd.f32 %v293, %v801
    %v1098 = vadd.f32 %v294, %v890
    %v1099 = vadd.f32 %v295, %v979
    %v1100 = vadd.f32 %v296, %v715
    %v1101 = vadd.f32 %v297, %v804
    %v1102 = vadd.f32 %v298, %v893
    %v1103 = vadd.f32 %v299, %v982
    %v1104 = vadd.f32 %v300, %v717
    %v1105 = vadd.f32 %v301, %v806
    %v1106 = vadd.f32 %v302, %v895
    %v1107 = vadd.f32 %v303, %v984
    %v1108 = vadd.f32 %v304, %v720
    %v1109 = vadd.f32 %v305, %v809
    %v1110 = vadd.f32 %v306, %v898
    %v1111 = vadd.f32 %v307, %v987
    %v1112 = vadd.f32 %v308, %v722
    %v1113 = vadd.f32 %v309, %v811
    %v1114 = vadd.f32 %v310, %v900
    %v1115 = vadd.f32 %v311, %v989
    %v1116 = vadd.f32 %v312, %v725
    %v1117 = vadd.f32 %v313, %v814
    %v1118 = vadd.f32 %v314, %v903
    %v1119 = vadd.f32 %v315, %v992
    %v1120 = vadd.f32 %v316, %v727
    %v1121 = vadd.f32 %v317, %v816
    %v1122 = vadd.f32 %v318, %v905
    %v1123 = vadd.f32 %v319, %v994
    %1124 = vst [vmem:[#allocation2] sm:$0xff] %v996
    %1125 = vst [vmem:[#allocation2 + $0x8] sm:$0xff] %v997
    %1126 = vst [vmem:[#allocation2 + $0x10] sm:$0xff] %v998
    %1127 = vst [vmem:[#allocation2 + $0x18] sm:$0xff] %v999
    %1128 = vst [vmem:[#allocation2 + $0x20] sm:$0xff] %v1000
    %1129 = vst [vmem:[#allocation2 + $0x28] sm:$0xff] %v1001
    %1130 = vst [vmem:[#allocation2 + $0x30] sm:$0xff] %v1002
    %1131 = vst [vmem:[#allocation2 + $0x38] sm:$0xff] %v1003
    %1132 = vst [vmem:[#allocation2 + $0x40] sm:$0xff] %v1004
    %1133 = vst [vmem:[#allocation2 + $0x48] sm:$0xff] %v1005
    %1134 = vst [vmem:[#allocation2 + $0x50] sm:$0xff] %v1006
    %1135 = vst [vmem:[#allocation2 + $0x58] sm:$0xff] %v1007
    %1136 = vst [vmem:[#allocation2 + $0x60] sm:$0xff] %v1008
    %1137 = vst [vmem:[#allocation2 + $0x68] sm:$0xff] %v1009
    %1138 = vst [vmem:[#allocation2 + $0x70] sm:$0xff] %v1010
    %1139 = vst [vmem:[#allocation2 + $0x78] sm:$0xff] %v1011
    %1140 = vst [vmem:[#allocation2 + $0x80] sm:$0xff] %v1012
    %1141 = vst [vmem:[#allocation2 + $0x88] sm:$0xff] %v1013
    %1142 = vst [vmem:[#allocation2 + $0x90] sm:$0xff] %v1014
    %1143 = vst [vmem:[#allocation2 + $0x98] sm:$0xff] %v1015
    %1144 = vst [vmem:[#allocation2 + $0xa0] sm:$0xff] %v1016
    %1145 = vst [vmem:[#allocation2 + $0xa8] sm:$0xff] %v1017
    %1146 = vst [vmem:[#allocation2 + $0xb0] sm:$0xff] %v1018
    %1147 = vst [vmem:[#allocation2 + $0xb8] sm:$0xff] %v1019
    %1148 = vst [vmem:[#allocation2 + $0xc0] sm:$0xff] %v1020
    %1149 = vst [vmem:[#allocation2 + $0xc8] sm:$0xff] %v1021
    %1150 = vst [vmem:[#allocation2 + $0xd0] sm:$0xff] %v1022
    %1151 = vst [vmem:[#allocation2 + $0xd8] sm:$0xff] %v1023
    %1152 = vst [vmem:[#allocation2 + $0xe0] sm:$0xff] %v1024
    %1153 = vst [vmem:[#allocation2 + $0xe8] sm:$0xff] %v1025
    %1154 = vst [vmem:[#allocation2 + $0xf0] sm:$0xff] %v1026
    %1155 = vst [vmem:[#allocation2 + $0xf8] sm:$0xff] %v1027
    %1156 = vst [vmem:[#allocation2 + $0x100] sm:$0xff] %v1028
    %1157 = vst [vmem:[#allocation2 + $0x108] sm:$0xff] %v1029
    %1158 = vst [vmem:[#allocation2 + $0x110] sm:$0xff] %v1030
    %1159 = vst [vmem:[#allocation2 + $0x118] sm:$0xff] %v1031
    %1160 = vst [vmem:[#allocation2 + $0x120] sm:$0xff] %v1032
    %1161 = vst [vmem:[#allocation2 + $0x128] sm:$0xff] %v1033
    %1162 = vst [vmem:[#allocation2 + $0x130] sm:$0xff] %v1034
    %1163 = vst [vmem:[#allocation2 + $0x138] sm:$0xff] %v1035
    %1164 = vst [vmem:[#allocation2 + $0x140] sm:$0xff] %v1036
    %1165 = vst [vmem:[#allocation2 + $0x148] sm:$0xff] %v1037
    %1166 = vst [vmem:[#allocation2 + $0x150] sm:$0xff] %v1038
    %1167 = vst [vmem:[#allocation2 + $0x158] sm:$0xff] %v1039
    %1168 = vst [vmem:[#allocation2 + $0x160] sm:$0xff] %v1040
    %1169 = vst [vmem:[#allocation2 + $0x168] sm:$0xff] %v1041
    %1170 = vst [vmem:[#allocation2 + $0x170] sm:$0xff] %v1042
    %1171 = vst [vmem:[#allocation2 + $0x178] sm:$0xff] %v1043
    %1172 = vst [vmem:[#allocation2 + $0x180] sm:$0xff] %v1044
    %1173 = vst [vmem:[#allocation2 + $0x188] sm:$0xff] %v1045
    %1174 = vst [vmem:[#allocation2 + $0x190] sm:$0xff] %v1046
    %1175 = vst [vmem:[#allocation2 + $0x198] sm:$0xff] %v1047
    %1176 = vst [vmem:[#allocation2 + $0x1a0] sm:$0xff] %v1048
    %1177 = vst [vmem:[#allocation2 + $0x1a8] sm:$0xff] %v1049
    %1178 = vst [vmem:[#allocation2 + $0x1b0] sm:$0xff] %v1050
    %1179 = vst [vmem:[#allocation2 + $0x1b8] sm:$0xff] %v1051
    %1180 = vst [vmem:[#allocation2 + $0x1c0] sm:$0xff] %v1052
    %1181 = vst [vmem:[#allocation2 + $0x1c8] sm:$0xff] %v1053
    %1182 = vst [vmem:[#allocation2 + $0x1d0] sm:$0xff] %v1054
    %1183 = vst [vmem:[#allocation2 + $0x1d8] sm:$0xff] %v1055
    %1184 = vst [vmem:[#allocation2 + $0x1e0] sm:$0xff] %v1056
    %1185 = vst [vmem:[#allocation2 + $0x1e8] sm:$0xff] %v1057
    %1186 = vst [vmem:[#allocation2 + $0x1f0] sm:$0xff] %v1058
    %1187 = vst [vmem:[#allocation2 + $0x1f8] sm:$0xff] %v1059
    %1188 = vst [vmem:[#allocation2 + $0x200] sm:$0xff] %v1060
    %1189 = vst [vmem:[#allocation2 + $0x208] sm:$0xff] %v1061
    %1190 = vst [vmem:[#allocation2 + $0x210] sm:$0xff] %v1062
    %1191 = vst [vmem:[#allocation2 + $0x218] sm:$0xff] %v1063
    %1192 = vst [vmem:[#allocation2 + $0x220] sm:$0xff] %v1064
    %1193 = vst [vmem:[#allocation2 + $0x228] sm:$0xff] %v1065
    %1194 = vst [vmem:[#allocation2 + $0x230] sm:$0xff] %v1066
    %1195 = vst [vmem:[#allocation2 + $0x238] sm:$0xff] %v1067
    %1196 = vst [vmem:[#allocation2 + $0x240] sm:$0xff] %v1068
    %1197 = vst [vmem:[#allocation2 + $0x248] sm:$0xff] %v1069
    %1198 = vst [vmem:[#allocation2 + $0x250] sm:$0xff] %v1070
    %1199 = vst [vmem:[#allocation2 + $0x258] sm:$0xff] %v1071
    %1200 = vst [vmem:[#allocation2 + $0x260] sm:$0xff] %v1072
    %1201 = vst [vmem:[#allocation2 + $0x268] sm:$0xff] %v1073
    %1202 = vst [vmem:[#allocation2 + $0x270] sm:$0xff] %v1074
    %1203 = vst [vmem:[#allocation2 + $0x278] sm:$0xff] %v1075
    %1204 = vst [vmem:[#allocation2 + $0x280] sm:$0xff] %v1076
    %1205 = vst [vmem:[#allocation2 + $0x288] sm:$0xff] %v1077
    %1206 = vst [vmem:[#allocation2 + $0x290] sm:$0xff] %v1078
    %1207 = vst [vmem:[#allocation2 + $0x298] sm:$0xff] %v1079
    %1208 = vst [vmem:[#allocation2 + $0x2a0] sm:$0xff] %v1080
    %1209 = vst [vmem:[#allocation2 + $0x2a8] sm:$0xff] %v1081
    %1210 = vst [vmem:[#allocation2 + $0x2b0] sm:$0xff] %v1082
    %1211 = vst [vmem:[#allocation2 + $0x2b8] sm:$0xff] %v1083
    %1212 = vst [vmem:[#allocation2 + $0x2c0] sm:$0xff] %v1084
    %1213 = vst [vmem:[#allocation2 + $0x2c8] sm:$0xff] %v1085
    %1214 = vst [vmem:[#allocation2 + $0x2d0] sm:$0xff] %v1086
    %1215 = vst [vmem:[#allocation2 + $0x2d8] sm:$0xff] %v1087
    %1216 = vst [vmem:[#allocation2 + $0x2e0] sm:$0xff] %v1088
    %1217 = vst [vmem:[#allocation2 + $0x2e8] sm:$0xff] %v1089
    %1218 = vst [vmem:[#allocation2 + $0x2f0] sm:$0xff] %v1090
    %1219 = vst [vmem:[#allocation2 + $0x2f8] sm:$0xff] %v1091
    %1220 = vst [vmem:[#allocation2 + $0x300] sm:$0xff] %v1092
    %1221 = vst [vmem:[#allocation2 + $0x308] sm:$0xff] %v1093
    %1222 = vst [vmem:[#allocation2 + $0x310] sm:$0xff] %v1094
    %1223 = vst [vmem:[#allocation2 + $0x318] sm:$0xff] %v1095
    %1224 = vst [vmem:[#allocation2 + $0x320] sm:$0xff] %v1096
    %1225 = vst [vmem:[#allocation2 + $0x328] sm:$0xff] %v1097
    %1226 = vst [vmem:[#allocation2 + $0x330] sm:$0xff] %v1098
    %1227 = vst [vmem:[#allocation2 + $0x338] sm:$0xff] %v1099
    %1228 = vst [vmem:[#allocation2 + $0x340] sm:$0xff] %v1100
    %1229 = vst [vmem:[#allocation2 + $0x348] sm:$0xff] %v1101
    %1230 = vst [vmem:[#allocation2 + $0x350] sm:$0xff] %v1102
    %1231 = vst [vmem:[#allocation2 + $0x358] sm:$0xff] %v1103
    %1232 = vst [vmem:[#allocation2 + $0x360] sm:$0xff] %v1104
    %1233 = vst [vmem:[#allocation2 + $0x368] sm:$0xff] %v1105
    %1234 = vst [vmem:[#allocation2 + $0x370] sm:$0xff] %v1106
    %1235 = vst [vmem:[#allocation2 + $0x378] sm:$0xff] %v1107
    %1236 = vst [vmem:[#allocation2 + $0x380] sm:$0xff] %v1108
    %1237 = vst [vmem:[#allocation2 + $0x388] sm:$0xff] %v1109
    %1238 = vst [vmem:[#allocation2 + $0x390] sm:$0xff] %v1110
    %1239 = vst [vmem:[#allocation2 + $0x398] sm:$0xff] %v1111
    %1240 = vst [vmem:[#allocation2 + $0x3a0] sm:$0xff] %v1112
    %1241 = vst [vmem:[#allocation2 + $0x3a8] sm:$0xff] %v1113
    %1242 = vst [vmem:[#allocation2 + $0x3b0] sm:$0xff] %v1114
    %1243 = vst [vmem:[#allocation2 + $0x3b8] sm:$0xff] %v1115
    %1244 = vst [vmem:[#allocation2 + $0x3c0] sm:$0xff] %v1116
    %1245 = vst [vmem:[#allocation2 + $0x3c8] sm:$0xff] %v1117
    %1246 = vst [vmem:[#allocation2 + $0x3d0] sm:$0xff] %v1118
    %1247 = vst [vmem:[#allocation2 + $0x3d8] sm:$0xff] %v1119
    %1248 = vst [vmem:[#allocation2 + $0x3e0] sm:$0xff] %v1120
    %1249 = vst [vmem:[#allocation2 + $0x3e8] sm:$0xff] %v1121
    %1250 = vst [vmem:[#allocation2 + $0x3f0] sm:$0xff] %v1122
    %1251 = vst [vmem:[#allocation2 + $0x3f8] sm:$0xff] %v1123
    // Predicated region
    $region30: #{tpu_custom_call.1} parent=1 // pred_check
      %p1252 = pneg %p60
    $region31: #{tpu_custom_call.1} parent=1 // pred_check_branch
      %1254 = sbr.rel (%p1252) target = $region33
    $region32: #{tpu_custom_call.1} parent=1 // pred_region
      %v1255 = vld [vmem:[#allocation2] sm:$0xff]
      %v1256 = vld [vmem:[#allocation2 + $0x8] sm:$0xff]
      %v1257 = vld [vmem:[#allocation2 + $0x10] sm:$0xff]
      %v1258 = vld [vmem:[#allocation2 + $0x18] sm:$0xff]
      %v1259 = vld [vmem:[#allocation2 + $0x20] sm:$0xff]
      %v1260 = vld [vmem:[#allocation2 + $0x28] sm:$0xff]
      %v1261 = vld [vmem:[#allocation2 + $0x30] sm:$0xff]
      %v1262 = vld [vmem:[#allocation2 + $0x38] sm:$0xff]
      %v1263 = vld [vmem:[#allocation2 + $0x40] sm:$0xff]
      %v1264 = vld [vmem:[#allocation2 + $0x48] sm:$0xff]
      %v1265 = vld [vmem:[#allocation2 + $0x50] sm:$0xff]
      %v1266 = vld [vmem:[#allocation2 + $0x58] sm:$0xff]
      %v1267 = vld [vmem:[#allocation2 + $0x60] sm:$0xff]
      %v1268 = vld [vmem:[#allocation2 + $0x68] sm:$0xff]
      %v1269 = vld [vmem:[#allocation2 + $0x70] sm:$0xff]
      %v1270 = vld [vmem:[#allocation2 + $0x78] sm:$0xff]
      %v1271 = vld [vmem:[#allocation2 + $0x80] sm:$0xff]
      %v1272 = vld [vmem:[#allocation2 + $0x88] sm:$0xff]
      %v1273 = vld [vmem:[#allocation2 + $0x90] sm:$0xff]
      %v1274 = vld [vmem:[#allocation2 + $0x98] sm:$0xff]
      %v1275 = vld [vmem:[#allocation2 + $0xa0] sm:$0xff]
      %v1276 = vld [vmem:[#allocation2 + $0xa8] sm:$0xff]
      %v1277 = vld [vmem:[#allocation2 + $0xb0] sm:$0xff]
      %v1278 = vld [vmem:[#allocation2 + $0xb8] sm:$0xff]
      %v1279 = vld [vmem:[#allocation2 + $0xc0] sm:$0xff]
      %v1280 = vld [vmem:[#allocation2 + $0xc8] sm:$0xff]
      %v1281 = vld [vmem:[#allocation2 + $0xd0] sm:$0xff]
      %v1282 = vld [vmem:[#allocation2 + $0xd8] sm:$0xff]
      %v1283 = vld [vmem:[#allocation2 + $0xe0] sm:$0xff]
      %v1284 = vld [vmem:[#allocation2 + $0xe8] sm:$0xff]
      %v1285 = vld [vmem:[#allocation2 + $0xf0] sm:$0xff]
      %v1286 = vld [vmem:[#allocation2 + $0xf8] sm:$0xff]
      %v1287 = vld [vmem:[#allocation2 + $0x100] sm:$0xff]
      %v1288 = vld [vmem:[#allocation2 + $0x108] sm:$0xff]
      %v1289 = vld [vmem:[#allocation2 + $0x110] sm:$0xff]
      %v1290 = vld [vmem:[#allocation2 + $0x118] sm:$0xff]
      %v1291 = vld [vmem:[#allocation2 + $0x120] sm:$0xff]
      %v1292 = vld [vmem:[#allocation2 + $0x128] sm:$0xff]
      %v1293 = vld [vmem:[#allocation2 + $0x130] sm:$0xff]
      %v1294 = vld [vmem:[#allocation2 + $0x138] sm:$0xff]
      %v1295 = vld [vmem:[#allocation2 + $0x140] sm:$0xff]
      %v1296 = vld [vmem:[#allocation2 + $0x148] sm:$0xff]
      %v1297 = vld [vmem:[#allocation2 + $0x150] sm:$0xff]
      %v1298 = vld [vmem:[#allocation2 + $0x158] sm:$0xff]
      %v1299 = vld [vmem:[#allocation2 + $0x160] sm:$0xff]
      %v1300 = vld [vmem:[#allocation2 + $0x168] sm:$0xff]
      %v1301 = vld [vmem:[#allocation2 + $0x170] sm:$0xff]
      %v1302 = vld [vmem:[#allocation2 + $0x178] sm:$0xff]
      %v1303 = vld [vmem:[#allocation2 + $0x180] sm:$0xff]
      %v1304 = vld [vmem:[#allocation2 + $0x188] sm:$0xff]
      %v1305 = vld [vmem:[#allocation2 + $0x190] sm:$0xff]
      %v1306 = vld [vmem:[#allocation2 + $0x198] sm:$0xff]
      %v1307 = vld [vmem:[#allocation2 + $0x1a0] sm:$0xff]
      %v1308 = vld [vmem:[#allocation2 + $0x1a8] sm:$0xff]
      %v1309 = vld [vmem:[#allocation2 + $0x1b0] sm:$0xff]
      %v1310 = vld [vmem:[#allocation2 + $0x1b8] sm:$0xff]
      %v1311 = vld [vmem:[#allocation2 + $0x1c0] sm:$0xff]
      %v1312 = vld [vmem:[#allocation2 + $0x1c8] sm:$0xff]
      %v1313 = vld [vmem:[#allocation2 + $0x1d0] sm:$0xff]
      %v1314 = vld [vmem:[#allocation2 + $0x1d8] sm:$0xff]
      %v1315 = vld [vmem:[#allocation2 + $0x1e0] sm:$0xff]
      %v1316 = vld [vmem:[#allocation2 + $0x1e8] sm:$0xff]
      %v1317 = vld [vmem:[#allocation2 + $0x1f0] sm:$0xff]
      %v1318 = vld [vmem:[#allocation2 + $0x1f8] sm:$0xff]
      %v1319 = vld [vmem:[#allocation2 + $0x200] sm:$0xff]
      %v1320 = vld [vmem:[#allocation2 + $0x208] sm:$0xff]
      %v1321 = vld [vmem:[#allocation2 + $0x210] sm:$0xff]
      %v1322 = vld [vmem:[#allocation2 + $0x218] sm:$0xff]
      %v1323 = vld [vmem:[#allocation2 + $0x220] sm:$0xff]
      %v1324 = vld [vmem:[#allocation2 + $0x228] sm:$0xff]
      %v1325 = vld [vmem:[#allocation2 + $0x230] sm:$0xff]
      %v1326 = vld [vmem:[#allocation2 + $0x238] sm:$0xff]
      %v1327 = vld [vmem:[#allocation2 + $0x240] sm:$0xff]
      %v1328 = vld [vmem:[#allocation2 + $0x248] sm:$0xff]
      %v1329 = vld [vmem:[#allocation2 + $0x250] sm:$0xff]
      %v1330 = vld [vmem:[#allocation2 + $0x258] sm:$0xff]
      %v1331 = vld [vmem:[#allocation2 + $0x260] sm:$0xff]
      %v1332 = vld [vmem:[#allocation2 + $0x268] sm:$0xff]
      %v1333 = vld [vmem:[#allocation2 + $0x270] sm:$0xff]
      %v1334 = vld [vmem:[#allocation2 + $0x278] sm:$0xff]
      %v1335 = vld [vmem:[#allocation2 + $0x280] sm:$0xff]
      %v1336 = vld [vmem:[#allocation2 + $0x288] sm:$0xff]
      %v1337 = vld [vmem:[#allocation2 + $0x290] sm:$0xff]
      %v1338 = vld [vmem:[#allocation2 + $0x298] sm:$0xff]
      %v1339 = vld [vmem:[#allocation2 + $0x2a0] sm:$0xff]
      %v1340 = vld [vmem:[#allocation2 + $0x2a8] sm:$0xff]
      %v1341 = vld [vmem:[#allocation2 + $0x2b0] sm:$0xff]
      %v1342 = vld [vmem:[#allocation2 + $0x2b8] sm:$0xff]
      %v1343 = vld [vmem:[#allocation2 + $0x2c0] sm:$0xff]
      %v1344 = vld [vmem:[#allocation2 + $0x2c8] sm:$0xff]
      %v1345 = vld [vmem:[#allocation2 + $0x2d0] sm:$0xff]
      %v1346 = vld [vmem:[#allocation2 + $0x2d8] sm:$0xff]
      %v1347 = vld [vmem:[#allocation2 + $0x2e0] sm:$0xff]
      %v1348 = vld [vmem:[#allocation2 + $0x2e8] sm:$0xff]
      %v1349 = vld [vmem:[#allocation2 + $0x2f0] sm:$0xff]
      %v1350 = vld [vmem:[#allocation2 + $0x2f8] sm:$0xff]
      %v1351 = vld [vmem:[#allocation2 + $0x300] sm:$0xff]
      %v1352 = vld [vmem:[#allocation2 + $0x308] sm:$0xff]
      %v1353 = vld [vmem:[#allocation2 + $0x310] sm:$0xff]
      %v1354 = vld [vmem:[#allocation2 + $0x318] sm:$0xff]
      %v1355 = vld [vmem:[#allocation2 + $0x320] sm:$0xff]
      %v1356 = vld [vmem:[#allocation2 + $0x328] sm:$0xff]
      %v1357 = vld [vmem:[#allocation2 + $0x330] sm:$0xff]
      %v1358 = vld [vmem:[#allocation2 + $0x338] sm:$0xff]
      %v1359 = vld [vmem:[#allocation2 + $0x340] sm:$0xff]
      %v1360 = vld [vmem:[#allocation2 + $0x348] sm:$0xff]
      %v1361 = vld [vmem:[#allocation2 + $0x350] sm:$0xff]
      %v1362 = vld [vmem:[#allocation2 + $0x358] sm:$0xff]
      %v1363 = vld [vmem:[#allocation2 + $0x360] sm:$0xff]
      %v1364 = vld [vmem:[#allocation2 + $0x368] sm:$0xff]
      %v1365 = vld [vmem:[#allocation2 + $0x370] sm:$0xff]
      %v1366 = vld [vmem:[#allocation2 + $0x378] sm:$0xff]
      %v1367 = vld [vmem:[#allocation2 + $0x380] sm:$0xff]
      %v1368 = vld [vmem:[#allocation2 + $0x388] sm:$0xff]
      %v1369 = vld [vmem:[#allocation2 + $0x390] sm:$0xff]
      %v1370 = vld [vmem:[#allocation2 + $0x398] sm:$0xff]
      %v1371 = vld [vmem:[#allocation2 + $0x3a0] sm:$0xff]
      %v1372 = vld [vmem:[#allocation2 + $0x3a8] sm:$0xff]
      %v1373 = vld [vmem:[#allocation2 + $0x3b0] sm:$0xff]
      %v1374 = vld [vmem:[#allocation2 + $0x3b8] sm:$0xff]
      %v1375 = vld [vmem:[#allocation2 + $0x3c0] sm:$0xff]
      %v1376 = vld [vmem:[#allocation2 + $0x3c8] sm:$0xff]
      %v1377 = vld [vmem:[#allocation2 + $0x3d0] sm:$0xff]
      %v1378 = vld [vmem:[#allocation2 + $0x3d8] sm:$0xff]
      %v1379 = vld [vmem:[#allocation2 + $0x3e0] sm:$0xff]
      %v1380 = vld [vmem:[#allocation2 + $0x3e8] sm:$0xff]
      %v1381 = vld [vmem:[#allocation2 + $0x3f0] sm:$0xff]
      %v1382 = vld [vmem:[#allocation2 + $0x3f8] sm:$0xff]
      %v1383 = vld [vmem:[#allocation8] sm:$0xf]
      %v1385 = vperm.slane %v1383, 0
      %v1386 = vperm.slane %v1383, 1
      %v1387 = vperm.slane %v1383, 2
      %v1388 = vperm.slane %v1383, 3
      %v1393 = vadd.f32 %v1255, %v1385
      %v1394 = vadd.f32 %v1256, %v1386
      %v1395 = vadd.f32 %v1257, %v1387
      %v1396 = vadd.f32 %v1258, %v1388
      %v1397 = vadd.f32 %v1259, %v1385
      %v1398 = vadd.f32 %v1260, %v1386
      %v1399 = vadd.f32 %v1261, %v1387
      %v1400 = vadd.f32 %v1262, %v1388
      %v1401 = vadd.f32 %v1263, %v1385
      %v1402 = vadd.f32 %v1264, %v1386
      %v1403 = vadd.f32 %v1265, %v1387
      %v1404 = vadd.f32 %v1266, %v1388
      %v1405 = vadd.f32 %v1267, %v1385
      %v1406 = vadd.f32 %v1268, %v1386
      %v1407 = vadd.f32 %v1269, %v1387
      %v1408 = vadd.f32 %v1270, %v1388
      %v1409 = vadd.f32 %v1271, %v1385
      %v1410 = vadd.f32 %v1272, %v1386
      %v1411 = vadd.f32 %v1273, %v1387
      %v1412 = vadd.f32 %v1274, %v1388
      %v1413 = vadd.f32 %v1275, %v1385
      %v1414 = vadd.f32 %v1276, %v1386
      %v1415 = vadd.f32 %v1277, %v1387
      %v1416 = vadd.f32 %v1278, %v1388
      %v1417 = vadd.f32 %v1279, %v1385
      %v1418 = vadd.f32 %v1280, %v1386
      %v1419 = vadd.f32 %v1281, %v1387
      %v1420 = vadd.f32 %v1282, %v1388
      %v1421 = vadd.f32 %v1283, %v1385
      %v1422 = vadd.f32 %v1284, %v1386
      %v1423 = vadd.f32 %v1285, %v1387
      %v1424 = vadd.f32 %v1286, %v1388
      %v1425 = vadd.f32 %v1287, %v1385
      %v1426 = vadd.f32 %v1288, %v1386
      %v1427 = vadd.f32 %v1289, %v1387
      %v1428 = vadd.f32 %v1290, %v1388
      %v1429 = vadd.f32 %v1291, %v1385
      %v1430 = vadd.f32 %v1292, %v1386
      %v1431 = vadd.f32 %v1293, %v1387
      %v1432 = vadd.f32 %v1294, %v1388
      %v1433 = vadd.f32 %v1295, %v1385
      %v1434 = vadd.f32 %v1296, %v1386
      %v1435 = vadd.f32 %v1297, %v1387
      %v1436 = vadd.f32 %v1298, %v1388
      %v1437 = vadd.f32 %v1299, %v1385
      %v1438 = vadd.f32 %v1300, %v1386
      %v1439 = vadd.f32 %v1301, %v1387
      %v1440 = vadd.f32 %v1302, %v1388
      %v1441 = vadd.f32 %v1303, %v1385
      %v1442 = vadd.f32 %v1304, %v1386
      %v1443 = vadd.f32 %v1305, %v1387
      %v1444 = vadd.f32 %v1306, %v1388
      %v1445 = vadd.f32 %v1307, %v1385
      %v1446 = vadd.f32 %v1308, %v1386
      %v1447 = vadd.f32 %v1309, %v1387
      %v1448 = vadd.f32 %v1310, %v1388
      %v1449 = vadd.f32 %v1311, %v1385
      %v1450 = vadd.f32 %v1312, %v1386
      %v1451 = vadd.f32 %v1313, %v1387
      %v1452 = vadd.f32 %v1314, %v1388
      %v1453 = vadd.f32 %v1315, %v1385
      %v1454 = vadd.f32 %v1316, %v1386
      %v1455 = vadd.f32 %v1317, %v1387
      %v1456 = vadd.f32 %v1318, %v1388
      %v1457 = vadd.f32 %v1319, %v1385
      %v1458 = vadd.f32 %v1320, %v1386
      %v1459 = vadd.f32 %v1321, %v1387
      %v1460 = vadd.f32 %v1322, %v1388
      %v1461 = vadd.f32 %v1323, %v1385
      %v1462 = vadd.f32 %v1324, %v1386
      %v1463 = vadd.f32 %v1325, %v1387
      %v1464 = vadd.f32 %v1326, %v1388
      %v1465 = vadd.f32 %v1327, %v1385
      %v1466 = vadd.f32 %v1328, %v1386
      %v1467 = vadd.f32 %v1329, %v1387
      %v1468 = vadd.f32 %v1330, %v1388
      %v1469 = vadd.f32 %v1331, %v1385
      %v1470 = vadd.f32 %v1332, %v1386
      %v1471 = vadd.f32 %v1333, %v1387
      %v1472 = vadd.f32 %v1334, %v1388
      %v1473 = vadd.f32 %v1335, %v1385
      %v1474 = vadd.f32 %v1336, %v1386
      %v1475 = vadd.f32 %v1337, %v1387
      %v1476 = vadd.f32 %v1338, %v1388
      %v1477 = vadd.f32 %v1339, %v1385
      %v1478 = vadd.f32 %v1340, %v1386
      %v1479 = vadd.f32 %v1341, %v1387
      %v1480 = vadd.f32 %v1342, %v1388
      %v1481 = vadd.f32 %v1343, %v1385
      %v1482 = vadd.f32 %v1344, %v1386
      %v1483 = vadd.f32 %v1345, %v1387
      %v1484 = vadd.f32 %v1346, %v1388
      %v1485 = vadd.f32 %v1347, %v1385
      %v1486 = vadd.f32 %v1348, %v1386
      %v1487 = vadd.f32 %v1349, %v1387
      %v1488 = vadd.f32 %v1350, %v1388
      %v1489 = vadd.f32 %v1351, %v1385
      %v1490 = vadd.f32 %v1352, %v1386
      %v1491 = vadd.f32 %v1353, %v1387
      %v1492 = vadd.f32 %v1354, %v1388
      %v1493 = vadd.f32 %v1355, %v1385
      %v1494 = vadd.f32 %v1356, %v1386
      %v1495 = vadd.f32 %v1357, %v1387
      %v1496 = vadd.f32 %v1358, %v1388
      %v1497 = vadd.f32 %v1359, %v1385
      %v1498 = vadd.f32 %v1360, %v1386
      %v1499 = vadd.f32 %v1361, %v1387
      %v1500 = vadd.f32 %v1362, %v1388
      %v1501 = vadd.f32 %v1363, %v1385
      %v1502 = vadd.f32 %v1364, %v1386
      %v1503 = vadd.f32 %v1365, %v1387
      %v1504 = vadd.f32 %v1366, %v1388
      %v1505 = vadd.f32 %v1367, %v1385
      %v1506 = vadd.f32 %v1368, %v1386
      %v1507 = vadd.f32 %v1369, %v1387
      %v1508 = vadd.f32 %v1370, %v1388
      %v1509 = vadd.f32 %v1371, %v1385
      %v1510 = vadd.f32 %v1372, %v1386
      %v1511 = vadd.f32 %v1373, %v1387
      %v1512 = vadd.f32 %v1374, %v1388
      %v1513 = vadd.f32 %v1375, %v1385
      %v1514 = vadd.f32 %v1376, %v1386
      %v1515 = vadd.f32 %v1377, %v1387
      %v1516 = vadd.f32 %v1378, %v1388
      %v1517 = vadd.f32 %v1379, %v1385
      %v1518 = vadd.f32 %v1380, %v1386
      %v1519 = vadd.f32 %v1381, %v1387
      %v1520 = vadd.f32 %v1382, %v1388
      %1521 = vst [vmem:[#allocation9] sm:$0xff] %v1393
      %1522 = vst [vmem:[#allocation9 + $0x8] sm:$0xff] %v1394
      %1523 = vst [vmem:[#allocation9 + $0x10] sm:$0xff] %v1395
      %1524 = vst [vmem:[#allocation9 + $0x18] sm:$0xff] %v1396
      %1525 = vst [vmem:[#allocation9 + $0x20] sm:$0xff] %v1397
      %1526 = vst [vmem:[#allocation9 + $0x28] sm:$0xff] %v1398
      %1527 = vst [vmem:[#allocation9 + $0x30] sm:$0xff] %v1399
      %1528 = vst [vmem:[#allocation9 + $0x38] sm:$0xff] %v1400
      %1529 = vst [vmem:[#allocation9 + $0x40] sm:$0xff] %v1401
      %1530 = vst [vmem:[#allocation9 + $0x48] sm:$0xff] %v1402
      %1531 = vst [vmem:[#allocation9 + $0x50] sm:$0xff] %v1403
      %1532 = vst [vmem:[#allocation9 + $0x58] sm:$0xff] %v1404
      %1533 = vst [vmem:[#allocation9 + $0x60] sm:$0xff] %v1405
      %1534 = vst [vmem:[#allocation9 + $0x68] sm:$0xff] %v1406
      %1535 = vst [vmem:[#allocation9 + $0x70] sm:$0xff] %v1407
      %1536 = vst [vmem:[#allocation9 + $0x78] sm:$0xff] %v1408
      %1537 = vst [vmem:[#allocation9 + $0x80] sm:$0xff] %v1409
      %1538 = vst [vmem:[#allocation9 + $0x88] sm:$0xff] %v1410
      %1539 = vst [vmem:[#allocation9 + $0x90] sm:$0xff] %v1411
      %1540 = vst [vmem:[#allocation9 + $0x98] sm:$0xff] %v1412
      %1541 = vst [vmem:[#allocation9 + $0xa0] sm:$0xff] %v1413
      %1542 = vst [vmem:[#allocation9 + $0xa8] sm:$0xff] %v1414
      %1543 = vst [vmem:[#allocation9 + $0xb0] sm:$0xff] %v1415
      %1544 = vst [vmem:[#allocation9 + $0xb8] sm:$0xff] %v1416
      %1545 = vst [vmem:[#allocation9 + $0xc0] sm:$0xff] %v1417
      %1546 = vst [vmem:[#allocation9 + $0xc8] sm:$0xff] %v1418
      %1547 = vst [vmem:[#allocation9 + $0xd0] sm:$0xff] %v1419
      %1548 = vst [vmem:[#allocation9 + $0xd8] sm:$0xff] %v1420
      %1549 = vst [vmem:[#allocation9 + $0xe0] sm:$0xff] %v1421
      %1550 = vst [vmem:[#allocation9 + $0xe8] sm:$0xff] %v1422
      %1551 = vst [vmem:[#allocation9 + $0xf0] sm:$0xff] %v1423
      %1552 = vst [vmem:[#allocation9 + $0xf8] sm:$0xff] %v1424
      %1553 = vst [vmem:[#allocation9 + $0x100] sm:$0xff] %v1425
      %1554 = vst [vmem:[#allocation9 + $0x108] sm:$0xff] %v1426
      %1555 = vst [vmem:[#allocation9 + $0x110] sm:$0xff] %v1427
      %1556 = vst [vmem:[#allocation9 + $0x118] sm:$0xff] %v1428
      %1557 = vst [vmem:[#allocation9 + $0x120] sm:$0xff] %v1429
      %1558 = vst [vmem:[#allocation9 + $0x128] sm:$0xff] %v1430
      %1559 = vst [vmem:[#allocation9 + $0x130] sm:$0xff] %v1431
      %1560 = vst [vmem:[#allocation9 + $0x138] sm:$0xff] %v1432
      %1561 = vst [vmem:[#allocation9 + $0x140] sm:$0xff] %v1433
      %1562 = vst [vmem:[#allocation9 + $0x148] sm:$0xff] %v1434
      %1563 = vst [vmem:[#allocation9 + $0x150] sm:$0xff] %v1435
      %1564 = vst [vmem:[#allocation9 + $0x158] sm:$0xff] %v1436
      %1565 = vst [vmem:[#allocation9 + $0x160] sm:$0xff] %v1437
      %1566 = vst [vmem:[#allocation9 + $0x168] sm:$0xff] %v1438
      %1567 = vst [vmem:[#allocation9 + $0x170] sm:$0xff] %v1439
      %1568 = vst [vmem:[#allocation9 + $0x178] sm:$0xff] %v1440
      %1569 = vst [vmem:[#allocation9 + $0x180] sm:$0xff] %v1441
      %1570 = vst [vmem:[#allocation9 + $0x188] sm:$0xff] %v1442
      %1571 = vst [vmem:[#allocation9 + $0x190] sm:$0xff] %v1443
      %1572 = vst [vmem:[#allocation9 + $0x198] sm:$0xff] %v1444
      %1573 = vst [vmem:[#allocation9 + $0x1a0] sm:$0xff] %v1445
      %1574 = vst [vmem:[#allocation9 + $0x1a8] sm:$0xff] %v1446
      %1575 = vst [vmem:[#allocation9 + $0x1b0] sm:$0xff] %v1447
      %1576 = vst [vmem:[#allocation9 + $0x1b8] sm:$0xff] %v1448
      %1577 = vst [vmem:[#allocation9 + $0x1c0] sm:$0xff] %v1449
      %1578 = vst [vmem:[#allocation9 + $0x1c8] sm:$0xff] %v1450
      %1579 = vst [vmem:[#allocation9 + $0x1d0] sm:$0xff] %v1451
      %1580 = vst [vmem:[#allocation9 + $0x1d8] sm:$0xff] %v1452
      %1581 = vst [vmem:[#allocation9 + $0x1e0] sm:$0xff] %v1453
      %1582 = vst [vmem:[#allocation9 + $0x1e8] sm:$0xff] %v1454
      %1583 = vst [vmem:[#allocation9 + $0x1f0] sm:$0xff] %v1455
      %1584 = vst [vmem:[#allocation9 + $0x1f8] sm:$0xff] %v1456
      %1585 = vst [vmem:[#allocation9 + $0x200] sm:$0xff] %v1457
      %1586 = vst [vmem:[#allocation9 + $0x208] sm:$0xff] %v1458
      %1587 = vst [vmem:[#allocation9 + $0x210] sm:$0xff] %v1459
      %1588 = vst [vmem:[#allocation9 + $0x218] sm:$0xff] %v1460
      %1589 = vst [vmem:[#allocation9 + $0x220] sm:$0xff] %v1461
      %1590 = vst [vmem:[#allocation9 + $0x228] sm:$0xff] %v1462
      %1591 = vst [vmem:[#allocation9 + $0x230] sm:$0xff] %v1463
      %1592 = vst [vmem:[#allocation9 + $0x238] sm:$0xff] %v1464
      %1593 = vst [vmem:[#allocation9 + $0x240] sm:$0xff] %v1465
      %1594 = vst [vmem:[#allocation9 + $0x248] sm:$0xff] %v1466
      %1595 = vst [vmem:[#allocation9 + $0x250] sm:$0xff] %v1467
      %1596 = vst [vmem:[#allocation9 + $0x258] sm:$0xff] %v1468
      %1597 = vst [vmem:[#allocation9 + $0x260] sm:$0xff] %v1469
      %1598 = vst [vmem:[#allocation9 + $0x268] sm:$0xff] %v1470
      %1599 = vst [vmem:[#allocation9 + $0x270] sm:$0xff] %v1471
      %1600 = vst [vmem:[#allocation9 + $0x278] sm:$0xff] %v1472
      %1601 = vst [vmem:[#allocation9 + $0x280] sm:$0xff] %v1473
      %1602 = vst [vmem:[#allocation9 + $0x288] sm:$0xff] %v1474
      %1603 = vst [vmem:[#allocation9 + $0x290] sm:$0xff] %v1475
      %1604 = vst [vmem:[#allocation9 + $0x298] sm:$0xff] %v1476
      %1605 = vst [vmem:[#allocation9 + $0x2a0] sm:$0xff] %v1477
      %1606 = vst [vmem:[#allocation9 + $0x2a8] sm:$0xff] %v1478
      %1607 = vst [vmem:[#allocation9 + $0x2b0] sm:$0xff] %v1479
      %1608 = vst [vmem:[#allocation9 + $0x2b8] sm:$0xff] %v1480
      %1609 = vst [vmem:[#allocation9 + $0x2c0] sm:$0xff] %v1481
      %1610 = vst [vmem:[#allocation9 + $0x2c8] sm:$0xff] %v1482
      %1611 = vst [vmem:[#allocation9 + $0x2d0] sm:$0xff] %v1483
      %1612 = vst [vmem:[#allocation9 + $0x2d8] sm:$0xff] %v1484
      %1613 = vst [vmem:[#allocation9 + $0x2e0] sm:$0xff] %v1485
      %1614 = vst [vmem:[#allocation9 + $0x2e8] sm:$0xff] %v1486
      %1615 = vst [vmem:[#allocation9 + $0x2f0] sm:$0xff] %v1487
      %1616 = vst [vmem:[#allocation9 + $0x2f8] sm:$0xff] %v1488
      %1617 = vst [vmem:[#allocation9 + $0x300] sm:$0xff] %v1489
      %1618 = vst [vmem:[#allocation9 + $0x308] sm:$0xff] %v1490
      %1619 = vst [vmem:[#allocation9 + $0x310] sm:$0xff] %v1491
      %1620 = vst [vmem:[#allocation9 + $0x318] sm:$0xff] %v1492
      %1621 = vst [vmem:[#allocation9 + $0x320] sm:$0xff] %v1493
      %1622 = vst [vmem:[#allocation9 + $0x328] sm:$0xff] %v1494
      %1623 = vst [vmem:[#allocation9 + $0x330] sm:$0xff] %v1495
      %1624 = vst [vmem:[#allocation9 + $0x338] sm:$0xff] %v1496
      %1625 = vst [vmem:[#allocation9 + $0x340] sm:$0xff] %v1497
      %1626 = vst [vmem:[#allocation9 + $0x348] sm:$0xff] %v1498
      %1627 = vst [vmem:[#allocation9 + $0x350] sm:$0xff] %v1499
      %1628 = vst [vmem:[#allocation9 + $0x358] sm:$0xff] %v1500
      %1629 = vst [vmem:[#allocation9 + $0x360] sm:$0xff] %v1501
      %1630 = vst [vmem:[#allocation9 + $0x368] sm:$0xff] %v1502
      %1631 = vst [vmem:[#allocation9 + $0x370] sm:$0xff] %v1503
      %1632 = vst [vmem:[#allocation9 + $0x378] sm:$0xff] %v1504
      %1633 = vst [vmem:[#allocation9 + $0x380] sm:$0xff] %v1505
      %1634 = vst [vmem:[#allocation9 + $0x388] sm:$0xff] %v1506
      %1635 = vst [vmem:[#allocation9 + $0x390] sm:$0xff] %v1507
      %1636 = vst [vmem:[#allocation9 + $0x398] sm:$0xff] %v1508
      %1637 = vst [vmem:[#allocation9 + $0x3a0] sm:$0xff] %v1509
      %1638 = vst [vmem:[#allocation9 + $0x3a8] sm:$0xff] %v1510
      %1639 = vst [vmem:[#allocation9 + $0x3b0] sm:$0xff] %v1511
      %1640 = vst [vmem:[#allocation9 + $0x3b8] sm:$0xff] %v1512
      %1641 = vst [vmem:[#allocation9 + $0x3c0] sm:$0xff] %v1513
      %1642 = vst [vmem:[#allocation9 + $0x3c8] sm:$0xff] %v1514
      %1643 = vst [vmem:[#allocation9 + $0x3d0] sm:$0xff] %v1515
      %1644 = vst [vmem:[#allocation9 + $0x3d8] sm:$0xff] %v1516
      %1645 = vst [vmem:[#allocation9 + $0x3e0] sm:$0xff] %v1517
      %1646 = vst [vmem:[#allocation9 + $0x3e8] sm:$0xff] %v1518
      %1647 = vst [vmem:[#allocation9 + $0x3f0] sm:$0xff] %v1519
      %1648 = vst [vmem:[#allocation9 + $0x3f8] sm:$0xff] %v1520
    $region33: #{tpu_custom_call.1} parent=1 // pred_fallthru
      _
    // Predicated region
    $region34: #{tpu_custom_call.1} parent=1 // pred_check
      _
    $region35: #{tpu_custom_call.1} parent=1 // pred_check_branch
      %1650 = sbr.rel (0) target = $region37
    $region36: #{tpu_custom_call.1} parent=1 // pred_region
      %1652 = vsyncadd [#allocation5], 0
      %s1653 = sshll.u32 [#allocation9], 4
      %s1654 = int_to_ptr.vmem [resolvable:$true] %s1653
      %s1655 = sshll.u32 %s3, 4
      %s1656 = int_to_ptr.hbm [resolvable:$true] %s1655
      %1661 = dma.vmem_to_hbm [thread:$0]  %s1654, 16384, %s1656, [#allocation5], 512, 512, 32
    $region37: #{tpu_custom_call.1} parent=1 // pred_fallthru
      _
    // Predicated region
    $region38: #{tpu_custom_call.1} parent=1 // pred_check
      _
    $region39: #{tpu_custom_call.1} parent=1 // pred_check_branch
      %1663 = sbr.rel (0) target = $region41
    $region40: #{tpu_custom_call.1} parent=1 // pred_region
      %1665 = dma.done [#allocation5], 16384
    $region41: #{tpu_custom_call.1} parent=1 // pred_fallthru
      _
    %1666 = vsyncpa [#allocation4], 1
    %1667 = vsyncpa [#allocation7], 1
    %1668 = vsyncpa [#allocation5], 1

</llo_original>
